<compile_context>
chip_gen: v7x
topology: tpu7x:2x2x1
jax: 0.10.0
libtpu: 0.0.40
codegen_flags: <defaults>
</compile_context>

<pallas_src>
import numpy as np
import jax
import jax.numpy as jnp
from jax import lax
from jax.experimental import pallas as pl
from jax.experimental.pallas import tpu as pltpu


def cnn2_kernel(p1_ref, w1_ref, w2_ref, b2_ref,
                fw1_ref, fb1_ref, fw2_ref, fb2_ref, o_ref):
    TB = p1_ref.shape[0]

    # ---- conv1 (+ folded bias) as ONE MXU matmul on bf16 patches:
    #      (TB*64, 32) @ (32, 64) -> f32.  Row = b*64 + py*16 + px*4 + dy*2 + dx.
    patches1 = p1_ref[...].reshape(TB * 64, 32)
    h1 = jnp.dot(patches1, w1_ref[...], preferred_element_type=jnp.float32)
    h1 = jnp.maximum(h1, 0.0)                                  # (TB*64, 64) f32

    # ---- both 2x2 max-pools in one grouped reduction: thanks to the im2col row
    #      ordering, every 4 consecutive rows are exactly one pooling window.
    pooled = jnp.max(h1.reshape(TB * 16, 4, 64), axis=1)       # (TB*16, 64), row = b*16+py*4+px

    # ---- conv2 as 9 accumulating MXU matmuls (one per 3x3 tap); each sliced
    #      (TB*4, 64) bf16 slab is consumed immediately by its dot.
    pr4 = pooled.astype(jnp.bfloat16).reshape(TB, 4, 4, 64)    # (b, py, px, cin)
    acc = jnp.zeros((TB * 4, 32), jnp.float32)
    for ky in range(3):
        for kx in range(3):
            slab = pr4[:, ky:ky + 2, kx:kx + 2, :].reshape(TB * 4, 64)
            wblk = w2_ref[(ky * 3 + kx) * 64:(ky * 3 + kx + 1) * 64, :]
            acc = acc + jnp.dot(slab, wblk, preferred_element_type=jnp.float32)
    h2 = jnp.maximum(acc + b2_ref[...], 0.0)                   # (TB*4, 32), row = b*4+oy2*2+ox2

    # ---- final 2x2 pool == max over the 4 conv2 positions per sample, flatten.
    flat = jnp.max(h2.reshape(TB, 4, 32), axis=1)              # (TB, 32) f32

    # ---- fc1 (padded to 128 lanes) + ReLU, fc2 (128x128 padded) -> lane-dense store.
    z1 = jnp.dot(flat.astype(jnp.bfloat16), fw1_ref[...],
                 preferred_element_type=jnp.float32) + fb1_ref[...]
    z1 = jnp.maximum(z1, 0.0)                                  # (TB, 128), cols 32.. are 0
    o_ref[...] = jnp.dot(z1.astype(jnp.bfloat16), fw2_ref[...],
                         preferred_element_type=jnp.float32) + fb2_ref[...]


def _vmem_capacity_bytes():
    try:
        cap = getattr(pltpu.get_tpu_info(), "vmem_capacity_bytes", None)
        if cap:
            return int(cap)
    except Exception:
        pass
    return 64 * 1024 * 1024          # conservative: v7x per-TensorCore VMEM


def cnn2_forward(x_nchw, params, *, tb=None):
    w1, b1, w2, b2, fw1, fb1, fw2, fb2 = params
    B = x_nchw.shape[0]

    # ---- conv1 im2col (Cin == 1, so NCHW -> HW is a free reshape).  Rows are
    # emitted in pooling-friendly order (b, py, px, dy, dx) with oy = 2py+dy,
    # ox = 2px+dx.  K is padded 25 -> 32 with column 25 = 1.0 (bias fold).
    x = x_nchw.reshape(B, 12, 12).astype(jnp.float32)
    taps = [x[:, ky:ky + 8, kx:kx + 8] for ky in range(5) for kx in range(5)]
    pt = jnp.stack(taps, axis=-1)                                   # (B, 8, 8, 25)
    pt = pt.reshape(B, 4, 2, 4, 2, 25).transpose(0, 1, 3, 2, 4, 5)  # (b,py,px,dy,dx,k)
    patches1 = jnp.concatenate(
        [pt.reshape(B, 64, 25),
         jnp.ones((B, 64, 1), jnp.float32),          # bias column
         jnp.zeros((B, 64, 6), jnp.float32)], axis=-1).astype(jnp.bfloat16)  # (B,64,32)

    # ---- weight prep (tiny; fused under jit).
    w1p = jnp.zeros((32, 64), jnp.float32).at[:25].set(w1).at[25].set(b1[0])
    w1p = w1p.astype(jnp.bfloat16)                                  # (32, 64), bias in row 25
    w2f = w2.reshape(576, 32).astype(jnp.bfloat16)                  # rows = (ky*3+kx)*64 + cin
    b2f = b2.astype(jnp.float32)                                    # (1, 32)
    fw1p = jnp.pad(fw1, ((0, 0), (0, 96))).astype(jnp.bfloat16)     # (32, 128)
    fb1p = jnp.pad(fb1, ((0, 0), (0, 96))).astype(jnp.float32)      # (1, 128)
    fw2p = jnp.pad(fw2, ((0, 96), (0, 126))).astype(jnp.bfloat16)   # (128, 128)
    fb2p = jnp.pad(fb2, ((0, 0), (0, 126))).astype(jnp.float32)     # (1, 128)

    # ---- batch tile & VMEM budget (per-chip): big tiles amortize per-step
    # overhead on 128 MiB parts; capped for v7x's 64 MiB per-core VMEM, and kept
    # to >=2 grid steps when possible so both v7x TensorCores get work.
    vmem_cap = _vmem_capacity_bytes()
    if tb is None:
        tb = 1024 if vmem_cap >= 100 * 1024 * 1024 else 512
    TB = min(tb, B)
    if B > 8 and pl.cdiv(B, TB) < 2:
        TB = min(TB, ((B + 1) // 2 + 7) // 8 * 8)
    grid = (pl.cdiv(B, TB),)

    def resident(a):
        return pl.BlockSpec(a.shape, lambda i, _nd=a.ndim: (0,) * _nd)

    flops = B * 2 * (64 * 32 * 64 + 4 * 576 * 32 + 32 * 128 + 128 * 128)
    w_elems = sum(int(np.prod(a.shape))
                  for a in (w1p, w2f, b2f, fw1p, fb1p, fw2p, fb2p))
    bytes_accessed = B * 64 * 32 * 2 + B * 128 * 4 + w_elems * 2
    cost = pl.CostEstimate(flops=flops, transcendentals=0,
                           bytes_accessed=bytes_accessed)

    out = pl.pallas_call(
        cnn2_kernel,
        out_shape=jax.ShapeDtypeStruct((B, 128), jnp.float32),
        grid=grid,
        in_specs=[pl.BlockSpec((TB, 64, 32), lambda i: (i, 0, 0)),
                  resident(w1p), resident(w2f), resident(b2f),
                  resident(fw1p), resident(fb1p), resident(fw2p), resident(fb2p)],
        out_specs=pl.BlockSpec((TB, 128), lambda i: (i, 0)),
        compiler_params=pltpu.CompilerParams(
            dimension_semantics=("parallel",),
            vmem_limit_bytes=min(vmem_cap * 3 // 4, 112 * 1024 * 1024)),
        cost_estimate=cost,
    )(patches1, w1p, w2f, b2f, fw1p, fb1p, fw2p, fb2p)

    # NOTE: if B % TB != 0 the last grid step computes on Pallas-padded rows;
    # rows are independent and the padded output rows are discarded here.
    return out[:, :2]


def cnn2_reference(x_nchw, params):
    # Pure-JAX reference matching the PyTorch forward (correctness check only).
    w1, b1, w2, b2, fw1, fb1, fw2, fb2 = params
    hp = lax.Precision.HIGHEST
    x = jnp.transpose(x_nchw, (0, 2, 3, 1))
    h = lax.conv_general_dilated(x, w1.reshape(5, 5, 1, 64), (1, 1), 'VALID',
                                 dimension_numbers=('NHWC', 'HWIO', 'NHWC'), precision=hp)
    h = jax.nn.relu(h + b1.reshape(1, 1, 1, 64))
    h = lax.reduce_window(h, -jnp.inf, lax.max, (1, 2, 2, 1), (1, 2, 2, 1), 'VALID')
    h = lax.conv_general_dilated(h, w2.reshape(3, 3, 64, 32), (1, 1), 'VALID',
                                 dimension_numbers=('NHWC', 'HWIO', 'NHWC'), precision=hp)
    h = jax.nn.relu(h + b2.reshape(1, 1, 1, 32))
    h = lax.reduce_window(h, -jnp.inf, lax.max, (1, 2, 2, 1), (1, 2, 2, 1), 'VALID')
    flat = h.reshape(h.shape[0], -1)
    z = jax.nn.relu(jnp.dot(flat, fw1, precision=hp) + fb1)
    return jnp.dot(z, fw2, precision=hp) + fb2


if __name__ == "__main__":
    key = jax.random.PRNGKey(0)
    ks = jax.random.split(key, 9)

    def uinit(k, shape, fan_in):
        bound = 1.0 / np.sqrt(fan_in)
        return jax.random.uniform(k, shape, jnp.float32, -bound, bound)

    params = (
        uinit(ks[0], (25, 64), 25),          # conv1 weight (5*5*1, 64)
        uinit(ks[1], (1, 64), 25),           # conv1 bias
        uinit(ks[2], (9, 64, 32), 64 * 9),   # conv2 weight (3*3, 64, 32)
        uinit(ks[3], (1, 32), 64 * 9),       # conv2 bias
        uinit(ks[4], (32, 32), 32),          # fc1 weight (in, out)
        uinit(ks[5], (1, 32), 32),           # fc1 bias
        uinit(ks[6], (32, 2), 32),           # fc2 weight (in, out)
        uinit(ks[7], (1, 2), 32),            # fc2 bias
    )
    # PyTorch-style NCHW input: (B=2, C=1, H=12, W=12) -> flatten gives 32 features for fc1
    x = jax.random.normal(ks[8], (2, 1, 12, 12), jnp.float32)

    fwd = jax.jit(lambda xx: cnn2_forward(xx, params))
    out = jax.block_until_ready(fwd(x))
    ref = jax.block_until_ready(cnn2_reference(x, params))
    assert out.shape == (2, 2), out.shape
    # bf16 matmul inputs with f32 accumulation -> a slightly relaxed tolerance.
    np.testing.assert_allclose(np.asarray(out), np.asarray(ref), rtol=2e-2, atol=2e-2)
    print("KERNEL_OK")
</pallas_src>

<mosaic_0001>
module attributes {stable_mosaic.version = 11 : i64} {
  func.func @cnn2_kernel(%arg0: i32, %arg1: memref<2x64x32xbf16, #tpu.memory_space<vmem>>, %arg2: memref<32x64xbf16, #tpu.memory_space<vmem>>, %arg3: memref<576x32xbf16, #tpu.memory_space<vmem>>, %arg4: memref<1x32xf32, #tpu.memory_space<vmem>>, %arg5: memref<32x128xbf16, #tpu.memory_space<vmem>>, %arg6: memref<1x128xf32, #tpu.memory_space<vmem>>, %arg7: memref<128x128xbf16, #tpu.memory_space<vmem>>, %arg8: memref<1x128xf32, #tpu.memory_space<vmem>>, %arg9: memref<2x128xf32, #tpu.memory_space<vmem>>) attributes {dimension_semantics = [#tpu.dimension_semantics<parallel>], iteration_bounds = array<i64: 1>, scalar_prefetch = 0 : i64, scratch_operands = 0 : i64, tpu.core_type = #tpu.core_type<tc>, window_params = [{transform_indices = @transform_0, window_bounds = array<i64: 2, 64, 32>}, {pipeline_mode = #tpu.pipeline_mode<synchronous>, transform_indices = @transform_1, window_bounds = array<i64: 32, 64>}, {pipeline_mode = #tpu.pipeline_mode<synchronous>, transform_indices = @transform_2, window_bounds = array<i64: 576, 32>}, {pipeline_mode = #tpu.pipeline_mode<synchronous>, transform_indices = @transform_3, window_bounds = array<i64: 1, 32>}, {pipeline_mode = #tpu.pipeline_mode<synchronous>, transform_indices = @transform_4, window_bounds = array<i64: 32, 128>}, {pipeline_mode = #tpu.pipeline_mode<synchronous>, transform_indices = @transform_5, window_bounds = array<i64: 1, 128>}, {pipeline_mode = #tpu.pipeline_mode<synchronous>, transform_indices = @transform_6, window_bounds = array<i64: 128, 128>}, {pipeline_mode = #tpu.pipeline_mode<synchronous>, transform_indices = @transform_7, window_bounds = array<i64: 1, 128>}, {transform_indices = @transform_8, window_bounds = array<i64: 2, 128>}]} {
    %c0 = arith.constant 0 : index
    %c0_0 = arith.constant 0 : index
    %c0_1 = arith.constant 0 : index
    %0 = vector.load %arg1[%c0, %c0_0, %c0_1] : memref<2x64x32xbf16, #tpu.memory_space<vmem>>, vector<2x64x32xbf16>
    %1 = vector.shape_cast %0 : vector<2x64x32xbf16> to vector<128x32xbf16>
    %c0_2 = arith.constant 0 : index
    %c0_3 = arith.constant 0 : index
    %2 = vector.load %arg2[%c0_2, %c0_3] : memref<32x64xbf16, #tpu.memory_space<vmem>>, vector<32x64xbf16>
    %cst = arith.constant dense<0.000000e+00> : vector<128x64xf32>
    %3 = tpu.matmul %1, %2, %cst {dimension_numbers = #tpu.dot_dimension_numbers<[1], [0], [0], [1], [0, 0, 1, 1], [], []>} : vector<128x32xbf16>, vector<32x64xbf16>, vector<128x64xf32> -> vector<128x64xf32>
    %cst_4 = arith.constant 0.000000e+00 : f32
    %4 = vector.broadcast %cst_4 : f32 to vector<128x64xf32>
    %5 = arith.maximumf %3, %4 : vector<128x64xf32>
    %6 = vector.shape_cast %5 : vector<128x64xf32> to vector<32x4x64xf32>
    %cst_5 = arith.constant dense<0xFF800000> : vector<32x64xf32>
    %7 = vector.multi_reduction <maximumf>, %6, %cst_5 [1] : vector<32x4x64xf32> to vector<32x64xf32>
    %8 = arith.truncf %7 : vector<32x64xf32> to vector<32x64xbf16>
    %9 = vector.shape_cast %8 : vector<32x64xbf16> to vector<2x4x4x64xbf16>
    %cst_6 = arith.constant 0.000000e+00 : f32
    %10 = vector.broadcast %cst_6 : f32 to vector<8x32xf32>
    %11 = vector.extract_strided_slice %9 {offsets = [0, 0, 0, 0], sizes = [2, 2, 2, 64], strides = [1, 1, 1, 1]} : vector<2x4x4x64xbf16> to vector<2x2x2x64xbf16>
    %12 = vector.shape_cast %11 : vector<2x2x2x64xbf16> to vector<8x64xbf16>
    %c0_7 = arith.constant 0 : index
    %c0_8 = arith.constant 0 : index
    %13 = vector.load %arg3[%c0_7, %c0_8] : memref<576x32xbf16, #tpu.memory_space<vmem>>, vector<64x32xbf16>
    %cst_9 = arith.constant dense<0.000000e+00> : vector<8x32xf32>
    %14 = tpu.matmul %12, %13, %cst_9 {dimension_numbers = #tpu.dot_dimension_numbers<[1], [0], [0], [1], [0, 0, 1, 1], [], []>} : vector<8x64xbf16>, vector<64x32xbf16>, vector<8x32xf32> -> vector<8x32xf32>
    %15 = arith.addf %10, %14 : vector<8x32xf32>
    %16 = vector.extract_strided_slice %9 {offsets = [0, 0, 1, 0], sizes = [2, 2, 2, 64], strides = [1, 1, 1, 1]} : vector<2x4x4x64xbf16> to vector<2x2x2x64xbf16>
    %17 = vector.shape_cast %16 : vector<2x2x2x64xbf16> to vector<8x64xbf16>
    %c64 = arith.constant 64 : index
    %c0_10 = arith.constant 0 : index
    %18 = vector.load %arg3[%c64, %c0_10] : memref<576x32xbf16, #tpu.memory_space<vmem>>, vector<64x32xbf16>
    %cst_11 = arith.constant dense<0.000000e+00> : vector<8x32xf32>
    %19 = tpu.matmul %17, %18, %cst_11 {dimension_numbers = #tpu.dot_dimension_numbers<[1], [0], [0], [1], [0, 0, 1, 1], [], []>} : vector<8x64xbf16>, vector<64x32xbf16>, vector<8x32xf32> -> vector<8x32xf32>
    %20 = arith.addf %15, %19 : vector<8x32xf32>
    %21 = vector.extract_strided_slice %9 {offsets = [0, 0, 2, 0], sizes = [2, 2, 2, 64], strides = [1, 1, 1, 1]} : vector<2x4x4x64xbf16> to vector<2x2x2x64xbf16>
    %22 = vector.shape_cast %21 : vector<2x2x2x64xbf16> to vector<8x64xbf16>
    %c128 = arith.constant 128 : index
    %c0_12 = arith.constant 0 : index
    %23 = vector.load %arg3[%c128, %c0_12] : memref<576x32xbf16, #tpu.memory_space<vmem>>, vector<64x32xbf16>
    %cst_13 = arith.constant dense<0.000000e+00> : vector<8x32xf32>
    %24 = tpu.matmul %22, %23, %cst_13 {dimension_numbers = #tpu.dot_dimension_numbers<[1], [0], [0], [1], [0, 0, 1, 1], [], []>} : vector<8x64xbf16>, vector<64x32xbf16>, vector<8x32xf32> -> vector<8x32xf32>
    %25 = arith.addf %20, %24 : vector<8x32xf32>
    %26 = vector.extract_strided_slice %9 {offsets = [0, 1, 0, 0], sizes = [2, 2, 2, 64], strides = [1, 1, 1, 1]} : vector<2x4x4x64xbf16> to vector<2x2x2x64xbf16>
    %27 = vector.shape_cast %26 : vector<2x2x2x64xbf16> to vector<8x64xbf16>
    %c192 = arith.constant 192 : index
    %c0_14 = arith.constant 0 : index
    %28 = vector.load %arg3[%c192, %c0_14] : memref<576x32xbf16, #tpu.memory_space<vmem>>, vector<64x32xbf16>
    %cst_15 = arith.constant dense<0.000000e+00> : vector<8x32xf32>
    %29 = tpu.matmul %27, %28, %cst_15 {dimension_numbers = #tpu.dot_dimension_numbers<[1], [0], [0], [1], [0, 0, 1, 1], [], []>} : vector<8x64xbf16>, vector<64x32xbf16>, vector<8x32xf32> -> vector<8x32xf32>
    %30 = arith.addf %25, %29 : vector<8x32xf32>
    %31 = vector.extract_strided_slice %9 {offsets = [0, 1, 1, 0], sizes = [2, 2, 2, 64], strides = [1, 1, 1, 1]} : vector<2x4x4x64xbf16> to vector<2x2x2x64xbf16>
    %32 = vector.shape_cast %31 : vector<2x2x2x64xbf16> to vector<8x64xbf16>
    %c256 = arith.constant 256 : index
    %c0_16 = arith.constant 0 : index
    %33 = vector.load %arg3[%c256, %c0_16] : memref<576x32xbf16, #tpu.memory_space<vmem>>, vector<64x32xbf16>
    %cst_17 = arith.constant dense<0.000000e+00> : vector<8x32xf32>
    %34 = tpu.matmul %32, %33, %cst_17 {dimension_numbers = #tpu.dot_dimension_numbers<[1], [0], [0], [1], [0, 0, 1, 1], [], []>} : vector<8x64xbf16>, vector<64x32xbf16>, vector<8x32xf32> -> vector<8x32xf32>
    %35 = arith.addf %30, %34 : vector<8x32xf32>
    %36 = vector.extract_strided_slice %9 {offsets = [0, 1, 2, 0], sizes = [2, 2, 2, 64], strides = [1, 1, 1, 1]} : vector<2x4x4x64xbf16> to vector<2x2x2x64xbf16>
    %37 = vector.shape_cast %36 : vector<2x2x2x64xbf16> to vector<8x64xbf16>
    %c320 = arith.constant 320 : index
    %c0_18 = arith.constant 0 : index
    %38 = vector.load %arg3[%c320, %c0_18] : memref<576x32xbf16, #tpu.memory_space<vmem>>, vector<64x32xbf16>
    %cst_19 = arith.constant dense<0.000000e+00> : vector<8x32xf32>
    %39 = tpu.matmul %37, %38, %cst_19 {dimension_numbers = #tpu.dot_dimension_numbers<[1], [0], [0], [1], [0, 0, 1, 1], [], []>} : vector<8x64xbf16>, vector<64x32xbf16>, vector<8x32xf32> -> vector<8x32xf32>
    %40 = arith.addf %35, %39 : vector<8x32xf32>
    %41 = vector.extract_strided_slice %9 {offsets = [0, 2, 0, 0], sizes = [2, 2, 2, 64], strides = [1, 1, 1, 1]} : vector<2x4x4x64xbf16> to vector<2x2x2x64xbf16>
    %42 = vector.shape_cast %41 : vector<2x2x2x64xbf16> to vector<8x64xbf16>
    %c384 = arith.constant 384 : index
    %c0_20 = arith.constant 0 : index
    %43 = vector.load %arg3[%c384, %c0_20] : memref<576x32xbf16, #tpu.memory_space<vmem>>, vector<64x32xbf16>
    %cst_21 = arith.constant dense<0.000000e+00> : vector<8x32xf32>
    %44 = tpu.matmul %42, %43, %cst_21 {dimension_numbers = #tpu.dot_dimension_numbers<[1], [0], [0], [1], [0, 0, 1, 1], [], []>} : vector<8x64xbf16>, vector<64x32xbf16>, vector<8x32xf32> -> vector<8x32xf32>
    %45 = arith.addf %40, %44 : vector<8x32xf32>
    %46 = vector.extract_strided_slice %9 {offsets = [0, 2, 1, 0], sizes = [2, 2, 2, 64], strides = [1, 1, 1, 1]} : vector<2x4x4x64xbf16> to vector<2x2x2x64xbf16>
    %47 = vector.shape_cast %46 : vector<2x2x2x64xbf16> to vector<8x64xbf16>
    %c448 = arith.constant 448 : index
    %c0_22 = arith.constant 0 : index
    %48 = vector.load %arg3[%c448, %c0_22] : memref<576x32xbf16, #tpu.memory_space<vmem>>, vector<64x32xbf16>
    %cst_23 = arith.constant dense<0.000000e+00> : vector<8x32xf32>
    %49 = tpu.matmul %47, %48, %cst_23 {dimension_numbers = #tpu.dot_dimension_numbers<[1], [0], [0], [1], [0, 0, 1, 1], [], []>} : vector<8x64xbf16>, vector<64x32xbf16>, vector<8x32xf32> -> vector<8x32xf32>
    %50 = arith.addf %45, %49 : vector<8x32xf32>
    %51 = vector.extract_strided_slice %9 {offsets = [0, 2, 2, 0], sizes = [2, 2, 2, 64], strides = [1, 1, 1, 1]} : vector<2x4x4x64xbf16> to vector<2x2x2x64xbf16>
    %52 = vector.shape_cast %51 : vector<2x2x2x64xbf16> to vector<8x64xbf16>
    %c512 = arith.constant 512 : index
    %c0_24 = arith.constant 0 : index
    %53 = vector.load %arg3[%c512, %c0_24] : memref<576x32xbf16, #tpu.memory_space<vmem>>, vector<64x32xbf16>
    %cst_25 = arith.constant dense<0.000000e+00> : vector<8x32xf32>
    %54 = tpu.matmul %52, %53, %cst_25 {dimension_numbers = #tpu.dot_dimension_numbers<[1], [0], [0], [1], [0, 0, 1, 1], [], []>} : vector<8x64xbf16>, vector<64x32xbf16>, vector<8x32xf32> -> vector<8x32xf32>
    %55 = arith.addf %50, %54 : vector<8x32xf32>
    %c0_26 = arith.constant 0 : index
    %c0_27 = arith.constant 0 : index
    %56 = vector.load %arg4[%c0_26, %c0_27] : memref<1x32xf32, #tpu.memory_space<vmem>>, vector<1x32xf32>
    %57 = vector.broadcast %56 : vector<1x32xf32> to vector<8x32xf32>
    %58 = arith.addf %55, %57 : vector<8x32xf32>
    %cst_28 = arith.constant 0.000000e+00 : f32
    %59 = vector.broadcast %cst_28 : f32 to vector<8x32xf32>
    %60 = arith.maximumf %58, %59 : vector<8x32xf32>
    %61 = vector.shape_cast %60 : vector<8x32xf32> to vector<2x4x32xf32>
    %cst_29 = arith.constant dense<0xFF800000> : vector<2x32xf32>
    %62 = vector.multi_reduction <maximumf>, %61, %cst_29 [1] : vector<2x4x32xf32> to vector<2x32xf32>
    %63 = arith.truncf %62 : vector<2x32xf32> to vector<2x32xbf16>
    %c0_30 = arith.constant 0 : index
    %c0_31 = arith.constant 0 : index
    %64 = vector.load %arg5[%c0_30, %c0_31] : memref<32x128xbf16, #tpu.memory_space<vmem>>, vector<32x128xbf16>
    %cst_32 = arith.constant dense<0.000000e+00> : vector<2x128xf32>
    %65 = tpu.matmul %63, %64, %cst_32 {dimension_numbers = #tpu.dot_dimension_numbers<[1], [0], [0], [1], [0, 0, 1, 1], [], []>} : vector<2x32xbf16>, vector<32x128xbf16>, vector<2x128xf32> -> vector<2x128xf32>
    %c0_33 = arith.constant 0 : index
    %c0_34 = arith.constant 0 : index
    %66 = vector.load %arg6[%c0_33, %c0_34] : memref<1x128xf32, #tpu.memory_space<vmem>>, vector<1x128xf32>
    %67 = vector.broadcast %66 : vector<1x128xf32> to vector<2x128xf32>
    %68 = arith.addf %65, %67 : vector<2x128xf32>
    %cst_35 = arith.constant 0.000000e+00 : f32
    %69 = vector.broadcast %cst_35 : f32 to vector<2x128xf32>
    %70 = arith.maximumf %68, %69 : vector<2x128xf32>
    %71 = arith.truncf %70 : vector<2x128xf32> to vector<2x128xbf16>
    %c0_36 = arith.constant 0 : index
    %c0_37 = arith.constant 0 : index
    %72 = vector.load %arg7[%c0_36, %c0_37] : memref<128x128xbf16, #tpu.memory_space<vmem>>, vector<128x128xbf16>
    %cst_38 = arith.constant dense<0.000000e+00> : vector<2x128xf32>
    %73 = tpu.matmul %71, %72, %cst_38 {dimension_numbers = #tpu.dot_dimension_numbers<[1], [0], [0], [1], [0, 0, 1, 1], [], []>} : vector<2x128xbf16>, vector<128x128xbf16>, vector<2x128xf32> -> vector<2x128xf32>
    %c0_39 = arith.constant 0 : index
    %c0_40 = arith.constant 0 : index
    %74 = vector.load %arg8[%c0_39, %c0_40] : memref<1x128xf32, #tpu.memory_space<vmem>>, vector<1x128xf32>
    %75 = vector.broadcast %74 : vector<1x128xf32> to vector<2x128xf32>
    %76 = arith.addf %73, %75 : vector<2x128xf32>
    %c0_41 = arith.constant 0 : index
    %c0_42 = arith.constant 0 : index
    %77 = vector.load %arg9[%c0_41, %c0_42] : memref<2x128xf32, #tpu.memory_space<vmem>>, vector<2x128xf32>
    tpu.vector_store %arg9[%c0_41, %c0_42], %76 {strides = array<i32>} : memref<2x128xf32, #tpu.memory_space<vmem>>, vector<2x128xf32>,
    return
  }
  func.func @transform_0(%arg0: i32) -> (i32, i32, i32) {
    %c0_i32 = arith.constant 0 : i32
    %c0_i32_0 = arith.constant 0 : i32
    %c0_i32_1 = arith.constant 0 : i32
    return %arg0, %c0_i32, %c0_i32_0 : i32, i32, i32
  }
  func.func @transform_1(%arg0: i32) -> (i32, i32) {
    %c0_i32 = arith.constant 0 : i32
    %c0_i32_0 = arith.constant 0 : i32
    %c0_i32_1 = arith.constant 0 : i32
    return %c0_i32, %c0_i32_0 : i32, i32
  }
  func.func @transform_2(%arg0: i32) -> (i32, i32) {
    %c0_i32 = arith.constant 0 : i32
    %c0_i32_0 = arith.constant 0 : i32
    %c0_i32_1 = arith.constant 0 : i32
    return %c0_i32, %c0_i32_0 : i32, i32
  }
  func.func @transform_3(%arg0: i32) -> (i32, i32) {
    %c0_i32 = arith.constant 0 : i32
    %c0_i32_0 = arith.constant 0 : i32
    %c0_i32_1 = arith.constant 0 : i32
    return %c0_i32, %c0_i32_0 : i32, i32
  }
  func.func @transform_4(%arg0: i32) -> (i32, i32) {
    %c0_i32 = arith.constant 0 : i32
    %c0_i32_0 = arith.constant 0 : i32
    %c0_i32_1 = arith.constant 0 : i32
    return %c0_i32, %c0_i32_0 : i32, i32
  }
  func.func @transform_5(%arg0: i32) -> (i32, i32) {
    %c0_i32 = arith.constant 0 : i32
    %c0_i32_0 = arith.constant 0 : i32
    %c0_i32_1 = arith.constant 0 : i32
    return %c0_i32, %c0_i32_0 : i32, i32
  }
  func.func @transform_6(%arg0: i32) -> (i32, i32) {
    %c0_i32 = arith.constant 0 : i32
    %c0_i32_0 = arith.constant 0 : i32
    %c0_i32_1 = arith.constant 0 : i32
    return %c0_i32, %c0_i32_0 : i32, i32
  }
  func.func @transform_7(%arg0: i32) -> (i32, i32) {
    %c0_i32 = arith.constant 0 : i32
    %c0_i32_0 = arith.constant 0 : i32
    %c0_i32_1 = arith.constant 0 : i32
    return %c0_i32, %c0_i32_0 : i32, i32
  }
  func.func @transform_8(%arg0: i32) -> (i32, i32) {
    %c0_i32 = arith.constant 0 : i32
    %c0_i32_0 = arith.constant 0 : i32
    return %arg0, %c0_i32 : i32, i32
  }
}

</mosaic_0001>

<llo_original>
// kernel: _lambda_.1
$region0: #{_lambda_.1}
  #allocation0 [shape = 'u32[]', space=smem, size = 0x4, offset = 0x4, fixed_abs, tag = 'smem constant byte address 0x4 - core index']
  #allocation1 [shape = 'u32[144,128]{1,0:T(1,128)}', space=vmem, size = 0x12000, scoped, tag = 'internal scratch']
  %s0 = inlined_call_operand.vmem [shape: bf16[2,64,32], index: 0, kind: input, shape index: {}]
  %s1 = inlined_call_operand.vmem [shape: bf16[32,64], index: 1, kind: input, shape index: {}]
  %s2 = inlined_call_operand.vmem [shape: bf16[576,32], index: 2, kind: input, shape index: {}]
  %s3 = inlined_call_operand.vmem [shape: f32[1,32], index: 3, kind: input, shape index: {}]
  %s4 = inlined_call_operand.vmem [shape: bf16[32,128], index: 4, kind: input, shape index: {}]
  %s5 = inlined_call_operand.vmem [shape: f32[1,128], index: 5, kind: input, shape index: {}]
  %s6 = inlined_call_operand.vmem [shape: bf16[128,128], index: 6, kind: input, shape index: {}]
  %s7 = inlined_call_operand.vmem [shape: f32[1,128], index: 7, kind: input, shape index: {}]
  %s8 = inlined_call_operand.hbm [shape: f32[2,128], index: 8, kind: output, shape index: {}]
  %s9 = sld [smem:[#allocation0]]
  $region42: #{_lambda_.1} parent=0
    _
  %s11 = ssub.s32 1, %s9
  %s12 = scalar_select 0, %s11, %s9
  $region1: #{_lambda_.1} parent=0
    #allocation2 [shape = 'u8[1024]{0}', space=vmem, size = 0x400, scoped, tag = 'output window, operand 0, single buffered']
    #allocation3 [shape = 's32[1]{0}', space=sflag, size = 0x4, scoped, tag = 'scoped memory for _lambda_.1']
    %13 = vsyncpa [#allocation3], 0
    // Predicated region
    $region2: #{_lambda_.1} parent=1 // pred_check
      _
    $region3: #{_lambda_.1} parent=1 // pred_check_branch
      %15 = sbr.rel (0) target = $region5
    $region4: #{_lambda_.1} parent=1 // pred_region
      _
    $region5: #{_lambda_.1} parent=1 // pred_fallthru
      _
    // Predicated region
    $region6: #{_lambda_.1} parent=1 // pred_check
      _
    $region7: #{_lambda_.1} parent=1 // pred_check_branch
      %17 = sbr.rel (0) target = $region9
    $region8: #{_lambda_.1} parent=1 // pred_region
      _
    $region9: #{_lambda_.1} parent=1 // pred_fallthru
      _
    // Predicated region
    $region10: #{_lambda_.1} parent=1 // pred_check
      _
    $region11: #{_lambda_.1} parent=1 // pred_check_branch
      %19 = sbr.rel (0) target = $region13
    $region12: #{_lambda_.1} parent=1 // pred_region
      _
    $region13: #{_lambda_.1} parent=1 // pred_fallthru
      _
    // Predicated region
    $region14: #{_lambda_.1} parent=1 // pred_check
      _
    $region15: #{_lambda_.1} parent=1 // pred_check_branch
      %21 = sbr.rel (0) target = $region17
    $region16: #{_lambda_.1} parent=1 // pred_region
      _
    $region17: #{_lambda_.1} parent=1 // pred_fallthru
      _
    // Predicated region
    $region18: #{_lambda_.1} parent=1 // pred_check
      _
    $region19: #{_lambda_.1} parent=1 // pred_check_branch
      %23 = sbr.rel (0) target = $region21
    $region20: #{_lambda_.1} parent=1 // pred_region
      _
    $region21: #{_lambda_.1} parent=1 // pred_fallthru
      _
    // Predicated region
    $region22: #{_lambda_.1} parent=1 // pred_check
      _
    $region23: #{_lambda_.1} parent=1 // pred_check_branch
      %25 = sbr.rel (0) target = $region25
    $region24: #{_lambda_.1} parent=1 // pred_region
      _
    $region25: #{_lambda_.1} parent=1 // pred_fallthru
      _
    // Predicated region
    $region26: #{_lambda_.1} parent=1 // pred_check
      _
    $region27: #{_lambda_.1} parent=1 // pred_check_branch
      %27 = sbr.rel (0) target = $region29
    $region28: #{_lambda_.1} parent=1 // pred_region
      _
    $region29: #{_lambda_.1} parent=1 // pred_fallthru
      _
    // Predicated region
    $region30: #{_lambda_.1} parent=1 // pred_check
      _
    $region31: #{_lambda_.1} parent=1 // pred_check_branch
      %29 = sbr.rel (0) target = $region33
    $region32: #{_lambda_.1} parent=1 // pred_region
      _
    $region33: #{_lambda_.1} parent=1 // pred_fallthru
      _
    %v31 = vld [vmem:[%s0] sm:$0xf]
    %v32 = vld [vmem:[%s0 + $0x4] sm:$0xf]
    %v33 = vld [vmem:[%s0 + $0x8] sm:$0xf]
    %v34 = vld [vmem:[%s0 + $0xc] sm:$0xf]
    %v35 = vld [vmem:[%s0 + $0x10] sm:$0xf]
    %v36 = vld [vmem:[%s0 + $0x14] sm:$0xf]
    %v37 = vld [vmem:[%s0 + $0x18] sm:$0xf]
    %v38 = vld [vmem:[%s0 + $0x1c] sm:$0xf]
    %v39 = vld [vmem:[%s0 + $0x20] sm:$0xf]
    %v40 = vld [vmem:[%s0 + $0x24] sm:$0xf]
    %v41 = vld [vmem:[%s0 + $0x28] sm:$0xf]
    %v42 = vld [vmem:[%s0 + $0x2c] sm:$0xf]
    %v43 = vld [vmem:[%s0 + $0x30] sm:$0xf]
    %v44 = vld [vmem:[%s0 + $0x34] sm:$0xf]
    %v45 = vld [vmem:[%s0 + $0x38] sm:$0xf]
    %v46 = vld [vmem:[%s0 + $0x3c] sm:$0xf]
    %v47 = vld [vmem:[%s1] sm:$0xf]
    %v48 = vld [vmem:[%s1 + $0x4] sm:$0xf]
    %v49 = vld [vmem:[%s1 + $0x8] sm:$0xf]
    %v50 = vld [vmem:[%s1 + $0xc] sm:$0xf]
    %v67 = vunpack.c.l.b16 %v31
    %v68 = vunpack.c.l.b16 %v32
    %v69 = vunpack.c.l.b16 %v33
    %v70 = vunpack.c.l.b16 %v34
    %v71 = vunpack.c.l.b16 %v35
    %v72 = vunpack.c.l.b16 %v36
    %v73 = vunpack.c.l.b16 %v37
    %v74 = vunpack.c.l.b16 %v38
    %v75 = vunpack.c.l.b16 %v39
    %v76 = vunpack.c.l.b16 %v40
    %v77 = vunpack.c.l.b16 %v41
    %v78 = vunpack.c.l.b16 %v42
    %v79 = vunpack.c.l.b16 %v43
    %v80 = vunpack.c.l.b16 %v44
    %v81 = vunpack.c.l.b16 %v45
    %v82 = vunpack.c.l.b16 %v46
    %v83 = vpack.c.b16 %v68, %v67
    %v84 = vpack.c.b16 %v70, %v69
    %v85 = vpack.c.b16 %v72, %v71
    %v86 = vpack.c.b16 %v74, %v73
    %v87 = vpack.c.b16 %v76, %v75
    %v88 = vpack.c.b16 %v78, %v77
    %v89 = vpack.c.b16 %v80, %v79
    %v90 = vpack.c.b16 %v82, %v81
    %v95 = vunpack.c.l.b16 %v47
    %v96 = vunpack.c.l.b16 %v48
    %v97 = vunpack.c.l.b16 %v49
    %v98 = vunpack.c.l.b16 %v50
    %v99 = vpack.c.b16 %v96, %v95
    %v100 = vpack.c.b16 %v98, %v97
    %vm103 = vcmask 261120
    %v105 = vsel %vm103, %v83, 0
    %v108 = vsel %vm103, %v84, 0
    %v111 = vsel %vm103, %v85, 0
    %v114 = vsel %vm103, %v86, 0
    %v117 = vsel %vm103, %v87, 0
    %v120 = vsel %vm103, %v88, 0
    %v123 = vsel %vm103, %v89, 0
    %v126 = vsel %vm103, %v90, 0
    %128 = vmatprep.subr.bf16.mxu0 0
    %129 = vmatpush1.bf16.msra.mxu0 %v99
    %130 = vmatprep.subr.bf16.mxu0 0
    %131 = vmatpush1.bf16.msra.mxu0 %v100
    %132 = vmatprep.subr.bf16.mxu0 0
    %133 = vmatpush1.bf16.msra.mxu0 0
    %134 = vmatprep.subr.bf16.mxu0 0
    %135 = vmatpush1.bf16.msra.mxu0 0
    %136 = vmatprep.subr.bf16.mxu0 0
    %137 = vmatpush1.bf16.msra.mxu0 0
    %138 = vmatprep.subr.bf16.mxu0 0
    %139 = vmatpush1.bf16.msra.mxu0 0
    %140 = vmatprep.subr.bf16.mxu0 0
    %141 = vmatpush1.bf16.msra.mxu0 0
    %142 = vmatprep.subr.bf16.mxu0 0
    %143 = vmatpush1.bf16.msra.mxu0 0
    %144 = vmatprep.subr.bf16.mxu0 0
    %145 = vmatpush1.bf16.msra.mxu0 0
    %146 = vmatprep.subr.bf16.mxu0 0
    %147 = vmatpush1.bf16.msra.mxu0 0
    %148 = vmatprep.subr.bf16.mxu0 0
    %149 = vmatpush1.bf16.msra.mxu0 0
    %150 = vmatprep.subr.bf16.mxu0 0
    %151 = vmatpush1.bf16.msra.mxu0 0
    %152 = vmatprep.subr.bf16.mxu0 0
    %153 = vmatpush1.bf16.msra.mxu0 0
    %154 = vmatprep.subr.bf16.mxu0 0
    %155 = vmatpush1.bf16.msra.mxu0 0
    %156 = vmatprep.subr.bf16.mxu0 0
    %157 = vmatpush1.bf16.msra.mxu0 0
    %158 = vmatprep.subr.bf16.mxu0 0
    %159 = vmatpush1.bf16.msra.mxu0 0
    %160 = vmatprep.mubr.bf16.mxu0 0
    %161 = vmatmul.mubr.bf16.gmra.mrb[0].mxu0 %v105
    %v162 = vpop.f32.mrb[0].mxu0
    %v163 = vadd.f32 0.0, %v162
    %v164 = vpop.f32.mrb[0].mxu0
    %v165 = vpop.f32.mrb[0].mxu0
    %v166 = vadd.f32 0.0, %v165
    %v167 = vpop.f32.mrb[0].mxu0
    %168 = vmatprep.mubr.bf16.mxu0 0
    %169 = vmatmul.mubr.bf16.gmra.mrb[0].mxu0 %v108
    %v170 = vpop.f32.mrb[0].mxu0
    %v171 = vadd.f32 0.0, %v170
    %v172 = vpop.f32.mrb[0].mxu0
    %v173 = vpop.f32.mrb[0].mxu0
    %v174 = vadd.f32 0.0, %v173
    %v175 = vpop.f32.mrb[0].mxu0
    %176 = vmatprep.mubr.bf16.mxu0 0
    %177 = vmatmul.mubr.bf16.gmra.mrb[0].mxu0 %v111
    %v178 = vpop.f32.mrb[0].mxu0
    %v179 = vadd.f32 0.0, %v178
    %v180 = vpop.f32.mrb[0].mxu0
    %v181 = vpop.f32.mrb[0].mxu0
    %v182 = vadd.f32 0.0, %v181
    %v183 = vpop.f32.mrb[0].mxu0
    %184 = vmatprep.mubr.bf16.mxu0 0
    %185 = vmatmul.mubr.bf16.gmra.mrb[0].mxu0 %v114
    %v186 = vpop.f32.mrb[0].mxu0
    %v187 = vadd.f32 0.0, %v186
    %v188 = vpop.f32.mrb[0].mxu0
    %v189 = vpop.f32.mrb[0].mxu0
    %v190 = vadd.f32 0.0, %v189
    %v191 = vpop.f32.mrb[0].mxu0
    %192 = vmatprep.mubr.bf16.mxu0 0
    %193 = vmatmul.mubr.bf16.gmra.mrb[0].mxu0 %v117
    %v194 = vpop.f32.mrb[0].mxu0
    %v195 = vadd.f32 0.0, %v194
    %v196 = vpop.f32.mrb[0].mxu0
    %v197 = vpop.f32.mrb[0].mxu0
    %v198 = vadd.f32 0.0, %v197
    %v199 = vpop.f32.mrb[0].mxu0
    %200 = vmatprep.mubr.bf16.mxu0 0
    %201 = vmatmul.mubr.bf16.gmra.mrb[0].mxu0 %v120
    %v202 = vpop.f32.mrb[0].mxu0
    %v203 = vadd.f32 0.0, %v202
    %v204 = vpop.f32.mrb[0].mxu0
    %v205 = vpop.f32.mrb[0].mxu0
    %v206 = vadd.f32 0.0, %v205
    %v207 = vpop.f32.mrb[0].mxu0
    %208 = vmatprep.mubr.bf16.mxu0 0
    %209 = vmatmul.mubr.bf16.gmra.mrb[0].mxu0 %v123
    %v210 = vpop.f32.mrb[0].mxu0
    %v211 = vadd.f32 0.0, %v210
    %v212 = vpop.f32.mrb[0].mxu0
    %v213 = vpop.f32.mrb[0].mxu0
    %v214 = vadd.f32 0.0, %v213
    %v215 = vpop.f32.mrb[0].mxu0
    %216 = vmatprep.mubr.bf16.mxu0 0
    %217 = vmatmul.mubr.bf16.gmra.mrb[0].mxu0 %v126
    %v218 = vpop.f32.mrb[0].mxu0
    %v219 = vadd.f32 0.0, %v218
    %v220 = vpop.f32.mrb[0].mxu0
    %v221 = vpop.f32.mrb[0].mxu0
    %v222 = vadd.f32 0.0, %v221
    %v223 = vpop.f32.mrb[0].mxu0
    %224 = vdwg.mxu0
    %v225 = vmax.f32 %v163, 0.0
    %v226 = vmax.f32 %v166, 0.0
    %v227 = vmax.f32 %v171, 0.0
    %v228 = vmax.f32 %v174, 0.0
    %v229 = vmax.f32 %v179, 0.0
    %v230 = vmax.f32 %v182, 0.0
    %v231 = vmax.f32 %v187, 0.0
    %v232 = vmax.f32 %v190, 0.0
    %v233 = vmax.f32 %v195, 0.0
    %v234 = vmax.f32 %v198, 0.0
    %v235 = vmax.f32 %v203, 0.0
    %v236 = vmax.f32 %v206, 0.0
    %v237 = vmax.f32 %v211, 0.0
    %v238 = vmax.f32 %v214, 0.0
    %v239 = vmax.f32 %v219, 0.0
    %v240 = vmax.f32 %v222, 0.0
    %v257 = vcombine.high %v225, %v225
    %v258 = vcombine.high %v226, %v226
    %v259 = vcombine.high %v227, %v227
    %v260 = vcombine.high %v228, %v228
    %v261 = vcombine.high %v229, %v229
    %v262 = vcombine.high %v230, %v230
    %v263 = vcombine.high %v231, %v231
    %v264 = vcombine.high %v232, %v232
    %v265 = vcombine.high %v233, %v233
    %v266 = vcombine.high %v234, %v234
    %v267 = vcombine.high %v235, %v235
    %v268 = vcombine.high %v236, %v236
    %v269 = vcombine.high %v237, %v237
    %v270 = vcombine.high %v238, %v238
    %v271 = vcombine.high %v239, %v239
    %v272 = vcombine.high %v240, %v240
    %vm289 = vcmask 519168
    %v290 = vsel %vm289, %v225, -inf
    %v291 = vrot.slane %v290, 4
    %v292 = vmax.f32 %v290, %v291
    %v293 = vrot.slane %v292, 2
    %v294 = vmax.f32 %v292, %v293
    %v295 = vrot.slane %v294, 1
    %v296 = vmax.f32 %v294, %v295
    %v297 = vsel %vm289, %v257, -inf
    %v298 = vrot.slane %v297, 4
    %v299 = vmax.f32 %v297, %v298
    %v300 = vrot.slane %v299, 2
    %v301 = vmax.f32 %v299, %v300
    %v302 = vrot.slane %v301, 1
    %v303 = vmax.f32 %v301, %v302
    %v304 = vsel %vm289, %v226, -inf
    %v305 = vrot.slane %v304, 4
    %v306 = vmax.f32 %v304, %v305
    %v307 = vrot.slane %v306, 2
    %v308 = vmax.f32 %v306, %v307
    %v309 = vrot.slane %v308, 1
    %v310 = vmax.f32 %v308, %v309
    %v311 = vsel %vm289, %v258, -inf
    %v312 = vrot.slane %v311, 4
    %v313 = vmax.f32 %v311, %v312
    %v314 = vrot.slane %v313, 2
    %v315 = vmax.f32 %v313, %v314
    %v316 = vrot.slane %v315, 1
    %v317 = vmax.f32 %v315, %v316
    %v318 = vsel %vm289, %v227, -inf
    %v319 = vrot.slane %v318, 4
    %v320 = vmax.f32 %v318, %v319
    %v321 = vrot.slane %v320, 2
    %v322 = vmax.f32 %v320, %v321
    %v323 = vrot.slane %v322, 1
    %v324 = vmax.f32 %v322, %v323
    %v325 = vsel %vm289, %v259, -inf
    %v326 = vrot.slane %v325, 4
    %v327 = vmax.f32 %v325, %v326
    %v328 = vrot.slane %v327, 2
    %v329 = vmax.f32 %v327, %v328
    %v330 = vrot.slane %v329, 1
    %v331 = vmax.f32 %v329, %v330
    %v332 = vsel %vm289, %v228, -inf
    %v333 = vrot.slane %v332, 4
    %v334 = vmax.f32 %v332, %v333
    %v335 = vrot.slane %v334, 2
    %v336 = vmax.f32 %v334, %v335
    %v337 = vrot.slane %v336, 1
    %v338 = vmax.f32 %v336, %v337
    %v339 = vsel %vm289, %v260, -inf
    %v340 = vrot.slane %v339, 4
    %v341 = vmax.f32 %v339, %v340
    %v342 = vrot.slane %v341, 2
    %v343 = vmax.f32 %v341, %v342
    %v344 = vrot.slane %v343, 1
    %v345 = vmax.f32 %v343, %v344
    %v346 = vsel %vm289, %v229, -inf
    %v347 = vrot.slane %v346, 4
    %v348 = vmax.f32 %v346, %v347
    %v349 = vrot.slane %v348, 2
    %v350 = vmax.f32 %v348, %v349
    %v351 = vrot.slane %v350, 1
    %v352 = vmax.f32 %v350, %v351
    %v353 = vsel %vm289, %v261, -inf
    %v354 = vrot.slane %v353, 4
    %v355 = vmax.f32 %v353, %v354
    %v356 = vrot.slane %v355, 2
    %v357 = vmax.f32 %v355, %v356
    %v358 = vrot.slane %v357, 1
    %v359 = vmax.f32 %v357, %v358
    %v360 = vsel %vm289, %v230, -inf
    %v361 = vrot.slane %v360, 4
    %v362 = vmax.f32 %v360, %v361
    %v363 = vrot.slane %v362, 2
    %v364 = vmax.f32 %v362, %v363
    %v365 = vrot.slane %v364, 1
    %v366 = vmax.f32 %v364, %v365
    %v367 = vsel %vm289, %v262, -inf
    %v368 = vrot.slane %v367, 4
    %v369 = vmax.f32 %v367, %v368
    %v370 = vrot.slane %v369, 2
    %v371 = vmax.f32 %v369, %v370
    %v372 = vrot.slane %v371, 1
    %v373 = vmax.f32 %v371, %v372
    %v374 = vsel %vm289, %v231, -inf
    %v375 = vrot.slane %v374, 4
    %v376 = vmax.f32 %v374, %v375
    %v377 = vrot.slane %v376, 2
    %v378 = vmax.f32 %v376, %v377
    %v379 = vrot.slane %v378, 1
    %v380 = vmax.f32 %v378, %v379
    %v381 = vsel %vm289, %v263, -inf
    %v382 = vrot.slane %v381, 4
    %v383 = vmax.f32 %v381, %v382
    %v384 = vrot.slane %v383, 2
    %v385 = vmax.f32 %v383, %v384
    %v386 = vrot.slane %v385, 1
    %v387 = vmax.f32 %v385, %v386
    %v388 = vsel %vm289, %v232, -inf
    %v389 = vrot.slane %v388, 4
    %v390 = vmax.f32 %v388, %v389
    %v391 = vrot.slane %v390, 2
    %v392 = vmax.f32 %v390, %v391
    %v393 = vrot.slane %v392, 1
    %v394 = vmax.f32 %v392, %v393
    %v395 = vsel %vm289, %v264, -inf
    %v396 = vrot.slane %v395, 4
    %v397 = vmax.f32 %v395, %v396
    %v398 = vrot.slane %v397, 2
    %v399 = vmax.f32 %v397, %v398
    %v400 = vrot.slane %v399, 1
    %v401 = vmax.f32 %v399, %v400
    %v402 = vsel %vm289, %v233, -inf
    %v403 = vrot.slane %v402, 4
    %v404 = vmax.f32 %v402, %v403
    %v405 = vrot.slane %v404, 2
    %v406 = vmax.f32 %v404, %v405
    %v407 = vrot.slane %v406, 1
    %v408 = vmax.f32 %v406, %v407
    %v409 = vsel %vm289, %v265, -inf
    %v410 = vrot.slane %v409, 4
    %v411 = vmax.f32 %v409, %v410
    %v412 = vrot.slane %v411, 2
    %v413 = vmax.f32 %v411, %v412
    %v414 = vrot.slane %v413, 1
    %v415 = vmax.f32 %v413, %v414
    %v416 = vsel %vm289, %v234, -inf
    %v417 = vrot.slane %v416, 4
    %v418 = vmax.f32 %v416, %v417
    %v419 = vrot.slane %v418, 2
    %v420 = vmax.f32 %v418, %v419
    %v421 = vrot.slane %v420, 1
    %v422 = vmax.f32 %v420, %v421
    %v423 = vsel %vm289, %v266, -inf
    %v424 = vrot.slane %v423, 4
    %v425 = vmax.f32 %v423, %v424
    %v426 = vrot.slane %v425, 2
    %v427 = vmax.f32 %v425, %v426
    %v428 = vrot.slane %v427, 1
    %v429 = vmax.f32 %v427, %v428
    %v430 = vsel %vm289, %v235, -inf
    %v431 = vrot.slane %v430, 4
    %v432 = vmax.f32 %v430, %v431
    %v433 = vrot.slane %v432, 2
    %v434 = vmax.f32 %v432, %v433
    %v435 = vrot.slane %v434, 1
    %v436 = vmax.f32 %v434, %v435
    %v437 = vsel %vm289, %v267, -inf
    %v438 = vrot.slane %v437, 4
    %v439 = vmax.f32 %v437, %v438
    %v440 = vrot.slane %v439, 2
    %v441 = vmax.f32 %v439, %v440
    %v442 = vrot.slane %v441, 1
    %v443 = vmax.f32 %v441, %v442
    %v444 = vsel %vm289, %v236, -inf
    %v445 = vrot.slane %v444, 4
    %v446 = vmax.f32 %v444, %v445
    %v447 = vrot.slane %v446, 2
    %v448 = vmax.f32 %v446, %v447
    %v449 = vrot.slane %v448, 1
    %v450 = vmax.f32 %v448, %v449
    %v451 = vsel %vm289, %v268, -inf
    %v452 = vrot.slane %v451, 4
    %v453 = vmax.f32 %v451, %v452
    %v454 = vrot.slane %v453, 2
    %v455 = vmax.f32 %v453, %v454
    %v456 = vrot.slane %v455, 1
    %v457 = vmax.f32 %v455, %v456
    %v458 = vsel %vm289, %v237, -inf
    %v459 = vrot.slane %v458, 4
    %v460 = vmax.f32 %v458, %v459
    %v461 = vrot.slane %v460, 2
    %v462 = vmax.f32 %v460, %v461
    %v463 = vrot.slane %v462, 1
    %v464 = vmax.f32 %v462, %v463
    %v465 = vsel %vm289, %v269, -inf
    %v466 = vrot.slane %v465, 4
    %v467 = vmax.f32 %v465, %v466
    %v468 = vrot.slane %v467, 2
    %v469 = vmax.f32 %v467, %v468
    %v470 = vrot.slane %v469, 1
    %v471 = vmax.f32 %v469, %v470
    %v472 = vsel %vm289, %v238, -inf
    %v473 = vrot.slane %v472, 4
    %v474 = vmax.f32 %v472, %v473
    %v475 = vrot.slane %v474, 2
    %v476 = vmax.f32 %v474, %v475
    %v477 = vrot.slane %v476, 1
    %v478 = vmax.f32 %v476, %v477
    %v479 = vsel %vm289, %v270, -inf
    %v480 = vrot.slane %v479, 4
    %v481 = vmax.f32 %v479, %v480
    %v482 = vrot.slane %v481, 2
    %v483 = vmax.f32 %v481, %v482
    %v484 = vrot.slane %v483, 1
    %v485 = vmax.f32 %v483, %v484
    %v486 = vsel %vm289, %v239, -inf
    %v487 = vrot.slane %v486, 4
    %v488 = vmax.f32 %v486, %v487
    %v489 = vrot.slane %v488, 2
    %v490 = vmax.f32 %v488, %v489
    %v491 = vrot.slane %v490, 1
    %v492 = vmax.f32 %v490, %v491
    %v493 = vsel %vm289, %v271, -inf
    %v494 = vrot.slane %v493, 4
    %v495 = vmax.f32 %v493, %v494
    %v496 = vrot.slane %v495, 2
    %v497 = vmax.f32 %v495, %v496
    %v498 = vrot.slane %v497, 1
    %v499 = vmax.f32 %v497, %v498
    %v500 = vsel %vm289, %v240, -inf
    %v501 = vrot.slane %v500, 4
    %v502 = vmax.f32 %v500, %v501
    %v503 = vrot.slane %v502, 2
    %v504 = vmax.f32 %v502, %v503
    %v505 = vrot.slane %v504, 1
    %v506 = vmax.f32 %v504, %v505
    %v507 = vsel %vm289, %v272, -inf
    %v508 = vrot.slane %v507, 4
    %v509 = vmax.f32 %v507, %v508
    %v510 = vrot.slane %v509, 2
    %v511 = vmax.f32 %v509, %v510
    %v512 = vrot.slane %v511, 1
    %v513 = vmax.f32 %v511, %v512
    %v514 = vpack.c.bf16 %v296, %v296
    %v515 = vpack.c.bf16 %v303, %v303
    %v516 = vpack.c.bf16 %v310, %v310
    %v517 = vpack.c.bf16 %v317, %v317
    %v518 = vpack.c.bf16 %v324, %v324
    %v519 = vpack.c.bf16 %v331, %v331
    %v520 = vpack.c.bf16 %v338, %v338
    %v521 = vpack.c.bf16 %v345, %v345
    %v522 = vpack.c.bf16 %v352, %v352
    %v523 = vpack.c.bf16 %v359, %v359
    %v524 = vpack.c.bf16 %v366, %v366
    %v525 = vpack.c.bf16 %v373, %v373
    %v526 = vpack.c.bf16 %v380, %v380
    %v527 = vpack.c.bf16 %v387, %v387
    %v528 = vpack.c.bf16 %v394, %v394
    %v529 = vpack.c.bf16 %v401, %v401
    %v530 = vpack.c.bf16 %v408, %v408
    %v531 = vpack.c.bf16 %v415, %v415
    %v532 = vpack.c.bf16 %v422, %v422
    %v533 = vpack.c.bf16 %v429, %v429
    %v534 = vpack.c.bf16 %v436, %v436
    %v535 = vpack.c.bf16 %v443, %v443
    %v536 = vpack.c.bf16 %v450, %v450
    %v537 = vpack.c.bf16 %v457, %v457
    %v538 = vpack.c.bf16 %v464, %v464
    %v539 = vpack.c.bf16 %v471, %v471
    %v540 = vpack.c.bf16 %v478, %v478
    %v541 = vpack.c.bf16 %v485, %v485
    %v542 = vpack.c.bf16 %v492, %v492
    %v543 = vpack.c.bf16 %v499, %v499
    %v544 = vpack.c.bf16 %v506, %v506
    %v545 = vpack.c.bf16 %v513, %v513
    %v546 = vld [vmem:[%s2] sm:$0xf]
    %v547 = vld [vmem:[%s2 + $0x4] sm:$0xf]
    %v548 = vld [vmem:[%s2 + $0x8] sm:$0xf]
    %v549 = vld [vmem:[%s2 + $0xc] sm:$0xf]
    %v550 = vld [vmem:[%s2 + $0x10] sm:$0xf]
    %v551 = vld [vmem:[%s2 + $0x14] sm:$0xf]
    %v552 = vld [vmem:[%s2 + $0x18] sm:$0xf]
    %v553 = vld [vmem:[%s2 + $0x1c] sm:$0xf]
    %v554 = vld [vmem:[%s2 + $0x20] sm:$0xf]
    %v555 = vld [vmem:[%s2 + $0x24] sm:$0xf]
    %v556 = vld [vmem:[%s2 + $0x28] sm:$0xf]
    %v557 = vld [vmem:[%s2 + $0x2c] sm:$0xf]
    %v558 = vld [vmem:[%s2 + $0x30] sm:$0xf]
    %v559 = vld [vmem:[%s2 + $0x34] sm:$0xf]
    %v560 = vld [vmem:[%s2 + $0x38] sm:$0xf]
    %v561 = vld [vmem:[%s2 + $0x3c] sm:$0xf]
    %v570 = vunpack.c.l.b16 %v515
    %v571 = vunpack.c.l.b16 %v516
    %v572 = vunpack.c.l.b16 %v519
    %v573 = vunpack.c.l.b16 %v520
    %v574 = vunpack.c.l.b16 %v531
    %v575 = vunpack.c.l.b16 %v532
    %v576 = vunpack.c.l.b16 %v535
    %v577 = vunpack.c.l.b16 %v536
    %vm578 = vcmask 1041409
    %v579 = vsel %vm578, %v571, %v570
    %vm580 = vcmask 1042434
    %v581 = vsel %vm580, %v572, %v579
    %vm582 = vcmask 1043459
    %v583 = vsel %vm582, %v573, %v581
    %vm584 = vcmask 1044484
    %v585 = vsel %vm584, %v574, %v583
    %vm586 = vcmask 1045509
    %v587 = vsel %vm586, %v575, %v585
    %vm588 = vcmask 1046534
    %v589 = vsel %vm588, %v576, %v587
    %vm590 = vcmask 1047559
    %v591 = vsel %vm590, %v577, %v589
    %v592 = vpack.c.b16 %v591, %v591
    %v601 = vunpack.c.l.b16 %v554
    %v602 = vunpack.c.l.b16 %v555
    %v603 = vunpack.c.l.b16 %v556
    %v604 = vunpack.c.l.b16 %v557
    %v605 = vunpack.c.l.b16 %v558
    %v606 = vunpack.c.l.b16 %v559
    %v607 = vunpack.c.l.b16 %v560
    %v608 = vunpack.c.l.b16 %v561
    %v609 = vpack.c.b16 %v602, %v601
    %v610 = vpack.c.b16 %v604, %v603
    %v611 = vpack.c.b16 %v606, %v605
    %v612 = vpack.c.b16 %v608, %v607
    %vm617 = vcmask 523264
    %v619 = vsel %vm617, %v592, 0
    %621 = vmatprep.subr.bf16.mxu0 0
    %622 = vmatpush1.bf16.msra.mxu0 %v609
    %623 = vmatprep.subr.bf16.mxu0 0
    %624 = vmatpush1.bf16.msra.mxu0 %v610
    %625 = vmatprep.subr.bf16.mxu0 0
    %626 = vmatpush1.bf16.msra.mxu0 %v611
    %627 = vmatprep.subr.bf16.mxu0 0
    %628 = vmatpush1.bf16.msra.mxu0 %v612
    %629 = vmatprep.subr.bf16.mxu0 0
    %630 = vmatpush1.bf16.msra.mxu0 0
    %631 = vmatprep.subr.bf16.mxu0 0
    %632 = vmatpush1.bf16.msra.mxu0 0
    %633 = vmatprep.subr.bf16.mxu0 0
    %634 = vmatpush1.bf16.msra.mxu0 0
    %635 = vmatprep.subr.bf16.mxu0 0
    %636 = vmatpush1.bf16.msra.mxu0 0
    %637 = vmatprep.subr.bf16.mxu0 0
    %638 = vmatpush1.bf16.msra.mxu0 0
    %639 = vmatprep.subr.bf16.mxu0 0
    %640 = vmatpush1.bf16.msra.mxu0 0
    %641 = vmatprep.subr.bf16.mxu0 0
    %642 = vmatpush1.bf16.msra.mxu0 0
    %643 = vmatprep.subr.bf16.mxu0 0
    %644 = vmatpush1.bf16.msra.mxu0 0
    %645 = vmatprep.subr.bf16.mxu0 0
    %646 = vmatpush1.bf16.msra.mxu0 0
    %647 = vmatprep.subr.bf16.mxu0 0
    %648 = vmatpush1.bf16.msra.mxu0 0
    %649 = vmatprep.subr.bf16.mxu0 0
    %650 = vmatpush1.bf16.msra.mxu0 0
    %651 = vmatprep.subr.bf16.mxu0 0
    %652 = vmatpush1.bf16.msra.mxu0 0
    %653 = vmatprep.mubr.bf16.mxu0 0
    %654 = vmatmul.mubr.bf16.gmra.mrb[0].mxu0 %v619
    %v655 = vpop.f32.mrb[0].mxu0
    %v656 = vadd.f32 0.0, %v655
    %v657 = vpop.f32.mrb[0].mxu0
    %v658 = vpop.f32.mrb[0].mxu0
    %v659 = vpop.f32.mrb[0].mxu0
    %660 = vdwg.mxu0
    %v665 = vunpack.c.l.b16 %v514
    %v666 = vunpack.c.l.b16 %v518
    %v667 = vunpack.c.l.b16 %v530
    %v668 = vunpack.c.l.b16 %v534
    %v669 = vsel %vm578, %v570, %v665
    %v670 = vsel %vm580, %v666, %v669
    %v671 = vsel %vm582, %v572, %v670
    %v672 = vsel %vm584, %v667, %v671
    %v673 = vsel %vm586, %v574, %v672
    %v674 = vsel %vm588, %v668, %v673
    %v675 = vsel %vm590, %v576, %v674
    %v676 = vpack.c.b16 %v675, %v675
    %v685 = vunpack.c.l.b16 %v546
    %v686 = vunpack.c.l.b16 %v547
    %v687 = vunpack.c.l.b16 %v548
    %v688 = vunpack.c.l.b16 %v549
    %v689 = vunpack.c.l.b16 %v550
    %v690 = vunpack.c.l.b16 %v551
    %v691 = vunpack.c.l.b16 %v552
    %v692 = vunpack.c.l.b16 %v553
    %v693 = vpack.c.b16 %v686, %v685
    %v694 = vpack.c.b16 %v688, %v687
    %v695 = vpack.c.b16 %v690, %v689
    %v696 = vpack.c.b16 %v692, %v691
    %v702 = vsel %vm617, %v676, 0
    %704 = vmatprep.subr.bf16.mxu0 0
    %705 = vmatpush1.bf16.msra.mxu0 %v693
    %706 = vmatprep.subr.bf16.mxu0 0
    %707 = vmatpush1.bf16.msra.mxu0 %v694
    %708 = vmatprep.subr.bf16.mxu0 0
    %709 = vmatpush1.bf16.msra.mxu0 %v695
    %710 = vmatprep.subr.bf16.mxu0 0
    %711 = vmatpush1.bf16.msra.mxu0 %v696
    %712 = vmatprep.subr.bf16.mxu0 0
    %713 = vmatpush1.bf16.msra.mxu0 0
    %714 = vmatprep.subr.bf16.mxu0 0
    %715 = vmatpush1.bf16.msra.mxu0 0
    %716 = vmatprep.subr.bf16.mxu0 0
    %717 = vmatpush1.bf16.msra.mxu0 0
    %718 = vmatprep.subr.bf16.mxu0 0
    %719 = vmatpush1.bf16.msra.mxu0 0
    %720 = vmatprep.subr.bf16.mxu0 0
    %721 = vmatpush1.bf16.msra.mxu0 0
    %722 = vmatprep.subr.bf16.mxu0 0
    %723 = vmatpush1.bf16.msra.mxu0 0
    %724 = vmatprep.subr.bf16.mxu0 0
    %725 = vmatpush1.bf16.msra.mxu0 0
    %726 = vmatprep.subr.bf16.mxu0 0
    %727 = vmatpush1.bf16.msra.mxu0 0
    %728 = vmatprep.subr.bf16.mxu0 0
    %729 = vmatpush1.bf16.msra.mxu0 0
    %730 = vmatprep.subr.bf16.mxu0 0
    %731 = vmatpush1.bf16.msra.mxu0 0
    %732 = vmatprep.subr.bf16.mxu0 0
    %733 = vmatpush1.bf16.msra.mxu0 0
    %734 = vmatprep.subr.bf16.mxu0 0
    %735 = vmatpush1.bf16.msra.mxu0 0
    %736 = vmatprep.mubr.bf16.mxu0 0
    %737 = vmatmul.mubr.bf16.gmra.mrb[0].mxu0 %v702
    %v738 = vpop.f32.mrb[0].mxu0
    %v739 = vadd.f32 %v656, %v738
    %v740 = vpop.f32.mrb[0].mxu0
    %v741 = vpop.f32.mrb[0].mxu0
    %v742 = vpop.f32.mrb[0].mxu0
    %743 = vdwg.mxu0
    %v744 = vld [vmem:[%s2 + $0x40] sm:$0xf]
    %v745 = vld [vmem:[%s2 + $0x44] sm:$0xf]
    %v746 = vld [vmem:[%s2 + $0x48] sm:$0xf]
    %v747 = vld [vmem:[%s2 + $0x4c] sm:$0xf]
    %v748 = vld [vmem:[%s2 + $0x50] sm:$0xf]
    %v749 = vld [vmem:[%s2 + $0x54] sm:$0xf]
    %v750 = vld [vmem:[%s2 + $0x58] sm:$0xf]
    %v751 = vld [vmem:[%s2 + $0x5c] sm:$0xf]
    %v756 = vunpack.c.l.b16 %v517
    %v757 = vunpack.c.l.b16 %v521
    %v758 = vunpack.c.l.b16 %v533
    %v759 = vunpack.c.l.b16 %v537
    %v760 = vsel %vm578, %v756, %v571
    %v761 = vsel %vm580, %v573, %v760
    %v762 = vsel %vm582, %v757, %v761
    %v763 = vsel %vm584, %v575, %v762
    %v764 = vsel %vm586, %v758, %v763
    %v765 = vsel %vm588, %v577, %v764
    %v766 = vsel %vm590, %v759, %v765
    %v767 = vpack.c.b16 %v766, %v766
    %v776 = vunpack.c.l.b16 %v744
    %v777 = vunpack.c.l.b16 %v745
    %v778 = vunpack.c.l.b16 %v746
    %v779 = vunpack.c.l.b16 %v747
    %v780 = vunpack.c.l.b16 %v748
    %v781 = vunpack.c.l.b16 %v749
    %v782 = vunpack.c.l.b16 %v750
    %v783 = vunpack.c.l.b16 %v751
    %v784 = vpack.c.b16 %v777, %v776
    %v785 = vpack.c.b16 %v779, %v778
    %v786 = vpack.c.b16 %v781, %v780
    %v787 = vpack.c.b16 %v783, %v782
    %v793 = vsel %vm617, %v767, 0
    %795 = vmatprep.subr.bf16.mxu0 0
    %796 = vmatpush1.bf16.msra.mxu0 %v784
    %797 = vmatprep.subr.bf16.mxu0 0
    %798 = vmatpush1.bf16.msra.mxu0 %v785
    %799 = vmatprep.subr.bf16.mxu0 0
    %800 = vmatpush1.bf16.msra.mxu0 %v786
    %801 = vmatprep.subr.bf16.mxu0 0
    %802 = vmatpush1.bf16.msra.mxu0 %v787
    %803 = vmatprep.subr.bf16.mxu0 0
    %804 = vmatpush1.bf16.msra.mxu0 0
    %805 = vmatprep.subr.bf16.mxu0 0
    %806 = vmatpush1.bf16.msra.mxu0 0
    %807 = vmatprep.subr.bf16.mxu0 0
    %808 = vmatpush1.bf16.msra.mxu0 0
    %809 = vmatprep.subr.bf16.mxu0 0
    %810 = vmatpush1.bf16.msra.mxu0 0
    %811 = vmatprep.subr.bf16.mxu0 0
    %812 = vmatpush1.bf16.msra.mxu0 0
    %813 = vmatprep.subr.bf16.mxu0 0
    %814 = vmatpush1.bf16.msra.mxu0 0
    %815 = vmatprep.subr.bf16.mxu0 0
    %816 = vmatpush1.bf16.msra.mxu0 0
    %817 = vmatprep.subr.bf16.mxu0 0
    %818 = vmatpush1.bf16.msra.mxu0 0
    %819 = vmatprep.subr.bf16.mxu0 0
    %820 = vmatpush1.bf16.msra.mxu0 0
    %821 = vmatprep.subr.bf16.mxu0 0
    %822 = vmatpush1.bf16.msra.mxu0 0
    %823 = vmatprep.subr.bf16.mxu0 0
    %824 = vmatpush1.bf16.msra.mxu0 0
    %825 = vmatprep.subr.bf16.mxu0 0
    %826 = vmatpush1.bf16.msra.mxu0 0
    %827 = vmatprep.mubr.bf16.mxu0 0
    %828 = vmatmul.mubr.bf16.gmra.mrb[0].mxu0 %v793
    %v829 = vpop.f32.mrb[0].mxu0
    %v830 = vadd.f32 0.0, %v829
    %v831 = vpop.f32.mrb[0].mxu0
    %v832 = vpop.f32.mrb[0].mxu0
    %v833 = vpop.f32.mrb[0].mxu0
    %834 = vdwg.mxu0
    %v835 = vadd.f32 %v739, %v830
    %v836 = vld [vmem:[%s2 + $0x60] sm:$0xf]
    %v837 = vld [vmem:[%s2 + $0x64] sm:$0xf]
    %v838 = vld [vmem:[%s2 + $0x68] sm:$0xf]
    %v839 = vld [vmem:[%s2 + $0x6c] sm:$0xf]
    %v840 = vld [vmem:[%s2 + $0x70] sm:$0xf]
    %v841 = vld [vmem:[%s2 + $0x74] sm:$0xf]
    %v842 = vld [vmem:[%s2 + $0x78] sm:$0xf]
    %v843 = vld [vmem:[%s2 + $0x7c] sm:$0xf]
    %v848 = vunpack.c.l.b16 %v522
    %v849 = vunpack.c.l.b16 %v523
    %v850 = vunpack.c.l.b16 %v538
    %v851 = vunpack.c.l.b16 %v539
    %v852 = vsel %vm578, %v572, %v666
    %v853 = vsel %vm580, %v848, %v852
    %v854 = vsel %vm582, %v849, %v853
    %v855 = vsel %vm584, %v668, %v854
    %v856 = vsel %vm586, %v576, %v855
    %v857 = vsel %vm588, %v850, %v856
    %v858 = vsel %vm590, %v851, %v857
    %v859 = vpack.c.b16 %v858, %v858
    %v868 = vunpack.c.l.b16 %v836
    %v869 = vunpack.c.l.b16 %v837
    %v870 = vunpack.c.l.b16 %v838
    %v871 = vunpack.c.l.b16 %v839
    %v872 = vunpack.c.l.b16 %v840
    %v873 = vunpack.c.l.b16 %v841
    %v874 = vunpack.c.l.b16 %v842
    %v875 = vunpack.c.l.b16 %v843
    %v876 = vpack.c.b16 %v869, %v868
    %v877 = vpack.c.b16 %v871, %v870
    %v878 = vpack.c.b16 %v873, %v872
    %v879 = vpack.c.b16 %v875, %v874
    %v885 = vsel %vm617, %v859, 0
    %887 = vmatprep.subr.bf16.mxu0 0
    %888 = vmatpush1.bf16.msra.mxu0 %v876
    %889 = vmatprep.subr.bf16.mxu0 0
    %890 = vmatpush1.bf16.msra.mxu0 %v877
    %891 = vmatprep.subr.bf16.mxu0 0
    %892 = vmatpush1.bf16.msra.mxu0 %v878
    %893 = vmatprep.subr.bf16.mxu0 0
    %894 = vmatpush1.bf16.msra.mxu0 %v879
    %895 = vmatprep.subr.bf16.mxu0 0
    %896 = vmatpush1.bf16.msra.mxu0 0
    %897 = vmatprep.subr.bf16.mxu0 0
    %898 = vmatpush1.bf16.msra.mxu0 0
    %899 = vmatprep.subr.bf16.mxu0 0
    %900 = vmatpush1.bf16.msra.mxu0 0
    %901 = vmatprep.subr.bf16.mxu0 0
    %902 = vmatpush1.bf16.msra.mxu0 0
    %903 = vmatprep.subr.bf16.mxu0 0
    %904 = vmatpush1.bf16.msra.mxu0 0
    %905 = vmatprep.subr.bf16.mxu0 0
    %906 = vmatpush1.bf16.msra.mxu0 0
    %907 = vmatprep.subr.bf16.mxu0 0
    %908 = vmatpush1.bf16.msra.mxu0 0
    %909 = vmatprep.subr.bf16.mxu0 0
    %910 = vmatpush1.bf16.msra.mxu0 0
    %911 = vmatprep.subr.bf16.mxu0 0
    %912 = vmatpush1.bf16.msra.mxu0 0
    %913 = vmatprep.subr.bf16.mxu0 0
    %914 = vmatpush1.bf16.msra.mxu0 0
    %915 = vmatprep.subr.bf16.mxu0 0
    %916 = vmatpush1.bf16.msra.mxu0 0
    %917 = vmatprep.subr.bf16.mxu0 0
    %918 = vmatpush1.bf16.msra.mxu0 0
    %919 = vmatprep.mubr.bf16.mxu0 0
    %920 = vmatmul.mubr.bf16.gmra.mrb[0].mxu0 %v885
    %v921 = vpop.f32.mrb[0].mxu0
    %v922 = vadd.f32 0.0, %v921
    %v923 = vpop.f32.mrb[0].mxu0
    %v924 = vpop.f32.mrb[0].mxu0
    %v925 = vpop.f32.mrb[0].mxu0
    %926 = vdwg.mxu0
    %v927 = vadd.f32 %v835, %v922
    %v928 = vld [vmem:[%s2 + $0x80] sm:$0xf]
    %v929 = vld [vmem:[%s2 + $0x84] sm:$0xf]
    %v930 = vld [vmem:[%s2 + $0x88] sm:$0xf]
    %v931 = vld [vmem:[%s2 + $0x8c] sm:$0xf]
    %v932 = vld [vmem:[%s2 + $0x90] sm:$0xf]
    %v933 = vld [vmem:[%s2 + $0x94] sm:$0xf]
    %v934 = vld [vmem:[%s2 + $0x98] sm:$0xf]
    %v935 = vld [vmem:[%s2 + $0x9c] sm:$0xf]
    %v938 = vunpack.c.l.b16 %v524
    %v939 = vunpack.c.l.b16 %v540
    %v940 = vsel %vm578, %v573, %v572
    %v941 = vsel %vm580, %v849, %v940
    %v942 = vsel %vm582, %v938, %v941
    %v943 = vsel %vm584, %v576, %v942
    %v944 = vsel %vm586, %v577, %v943
    %v945 = vsel %vm588, %v851, %v944
    %v946 = vsel %vm590, %v939, %v945
    %v947 = vpack.c.b16 %v946, %v946
    %v956 = vunpack.c.l.b16 %v928
    %v957 = vunpack.c.l.b16 %v929
    %v958 = vunpack.c.l.b16 %v930
    %v959 = vunpack.c.l.b16 %v931
    %v960 = vunpack.c.l.b16 %v932
    %v961 = vunpack.c.l.b16 %v933
    %v962 = vunpack.c.l.b16 %v934
    %v963 = vunpack.c.l.b16 %v935
    %v964 = vpack.c.b16 %v957, %v956
    %v965 = vpack.c.b16 %v959, %v958
    %v966 = vpack.c.b16 %v961, %v960
    %v967 = vpack.c.b16 %v963, %v962
    %v973 = vsel %vm617, %v947, 0
    %975 = vmatprep.subr.bf16.mxu0 0
    %976 = vmatpush1.bf16.msra.mxu0 %v964
    %977 = vmatprep.subr.bf16.mxu0 0
    %978 = vmatpush1.bf16.msra.mxu0 %v965
    %979 = vmatprep.subr.bf16.mxu0 0
    %980 = vmatpush1.bf16.msra.mxu0 %v966
    %981 = vmatprep.subr.bf16.mxu0 0
    %982 = vmatpush1.bf16.msra.mxu0 %v967
    %983 = vmatprep.subr.bf16.mxu0 0
    %984 = vmatpush1.bf16.msra.mxu0 0
    %985 = vmatprep.subr.bf16.mxu0 0
    %986 = vmatpush1.bf16.msra.mxu0 0
    %987 = vmatprep.subr.bf16.mxu0 0
    %988 = vmatpush1.bf16.msra.mxu0 0
    %989 = vmatprep.subr.bf16.mxu0 0
    %990 = vmatpush1.bf16.msra.mxu0 0
    %991 = vmatprep.subr.bf16.mxu0 0
    %992 = vmatpush1.bf16.msra.mxu0 0
    %993 = vmatprep.subr.bf16.mxu0 0
    %994 = vmatpush1.bf16.msra.mxu0 0
    %995 = vmatprep.subr.bf16.mxu0 0
    %996 = vmatpush1.bf16.msra.mxu0 0
    %997 = vmatprep.subr.bf16.mxu0 0
    %998 = vmatpush1.bf16.msra.mxu0 0
    %999 = vmatprep.subr.bf16.mxu0 0
    %1000 = vmatpush1.bf16.msra.mxu0 0
    %1001 = vmatprep.subr.bf16.mxu0 0
    %1002 = vmatpush1.bf16.msra.mxu0 0
    %1003 = vmatprep.subr.bf16.mxu0 0
    %1004 = vmatpush1.bf16.msra.mxu0 0
    %1005 = vmatprep.subr.bf16.mxu0 0
    %1006 = vmatpush1.bf16.msra.mxu0 0
    %1007 = vmatprep.mubr.bf16.mxu0 0
    %1008 = vmatmul.mubr.bf16.gmra.mrb[0].mxu0 %v973
    %v1009 = vpop.f32.mrb[0].mxu0
    %v1010 = vadd.f32 0.0, %v1009
    %v1011 = vpop.f32.mrb[0].mxu0
    %v1012 = vpop.f32.mrb[0].mxu0
    %v1013 = vpop.f32.mrb[0].mxu0
    %1014 = vdwg.mxu0
    %v1015 = vadd.f32 %v927, %v1010
    %v1016 = vld [vmem:[%s2 + $0xa0] sm:$0xf]
    %v1017 = vld [vmem:[%s2 + $0xa4] sm:$0xf]
    %v1018 = vld [vmem:[%s2 + $0xa8] sm:$0xf]
    %v1019 = vld [vmem:[%s2 + $0xac] sm:$0xf]
    %v1020 = vld [vmem:[%s2 + $0xb0] sm:$0xf]
    %v1021 = vld [vmem:[%s2 + $0xb4] sm:$0xf]
    %v1022 = vld [vmem:[%s2 + $0xb8] sm:$0xf]
    %v1023 = vld [vmem:[%s2 + $0xbc] sm:$0xf]
    %v1026 = vunpack.c.l.b16 %v525
    %v1027 = vunpack.c.l.b16 %v541
    %v1028 = vsel %vm578, %v757, %v573
    %v1029 = vsel %vm580, %v938, %v1028
    %v1030 = vsel %vm582, %v1026, %v1029
    %v1031 = vsel %vm584, %v577, %v1030
    %v1032 = vsel %vm586, %v759, %v1031
    %v1033 = vsel %vm588, %v939, %v1032
    %v1034 = vsel %vm590, %v1027, %v1033
    %v1035 = vpack.c.b16 %v1034, %v1034
    %v1044 = vunpack.c.l.b16 %v1016
    %v1045 = vunpack.c.l.b16 %v1017
    %v1046 = vunpack.c.l.b16 %v1018
    %v1047 = vunpack.c.l.b16 %v1019
    %v1048 = vunpack.c.l.b16 %v1020
    %v1049 = vunpack.c.l.b16 %v1021
    %v1050 = vunpack.c.l.b16 %v1022
    %v1051 = vunpack.c.l.b16 %v1023
    %v1052 = vpack.c.b16 %v1045, %v1044
    %v1053 = vpack.c.b16 %v1047, %v1046
    %v1054 = vpack.c.b16 %v1049, %v1048
    %v1055 = vpack.c.b16 %v1051, %v1050
    %v1061 = vsel %vm617, %v1035, 0
    %1063 = vmatprep.subr.bf16.mxu0 0
    %1064 = vmatpush1.bf16.msra.mxu0 %v1052
    %1065 = vmatprep.subr.bf16.mxu0 0
    %1066 = vmatpush1.bf16.msra.mxu0 %v1053
    %1067 = vmatprep.subr.bf16.mxu0 0
    %1068 = vmatpush1.bf16.msra.mxu0 %v1054
    %1069 = vmatprep.subr.bf16.mxu0 0
    %1070 = vmatpush1.bf16.msra.mxu0 %v1055
    %1071 = vmatprep.subr.bf16.mxu0 0
    %1072 = vmatpush1.bf16.msra.mxu0 0
    %1073 = vmatprep.subr.bf16.mxu0 0
    %1074 = vmatpush1.bf16.msra.mxu0 0
    %1075 = vmatprep.subr.bf16.mxu0 0
    %1076 = vmatpush1.bf16.msra.mxu0 0
    %1077 = vmatprep.subr.bf16.mxu0 0
    %1078 = vmatpush1.bf16.msra.mxu0 0
    %1079 = vmatprep.subr.bf16.mxu0 0
    %1080 = vmatpush1.bf16.msra.mxu0 0
    %1081 = vmatprep.subr.bf16.mxu0 0
    %1082 = vmatpush1.bf16.msra.mxu0 0
    %1083 = vmatprep.subr.bf16.mxu0 0
    %1084 = vmatpush1.bf16.msra.mxu0 0
    %1085 = vmatprep.subr.bf16.mxu0 0
    %1086 = vmatpush1.bf16.msra.mxu0 0
    %1087 = vmatprep.subr.bf16.mxu0 0
    %1088 = vmatpush1.bf16.msra.mxu0 0
    %1089 = vmatprep.subr.bf16.mxu0 0
    %1090 = vmatpush1.bf16.msra.mxu0 0
    %1091 = vmatprep.subr.bf16.mxu0 0
    %1092 = vmatpush1.bf16.msra.mxu0 0
    %1093 = vmatprep.subr.bf16.mxu0 0
    %1094 = vmatpush1.bf16.msra.mxu0 0
    %1095 = vmatprep.mubr.bf16.mxu0 0
    %1096 = vmatmul.mubr.bf16.gmra.mrb[0].mxu0 %v1061
    %v1097 = vpop.f32.mrb[0].mxu0
    %v1098 = vadd.f32 0.0, %v1097
    %v1099 = vpop.f32.mrb[0].mxu0
    %v1100 = vpop.f32.mrb[0].mxu0
    %v1101 = vpop.f32.mrb[0].mxu0
    %1102 = vdwg.mxu0
    %v1103 = vadd.f32 %v1015, %v1098
    %v1104 = vld [vmem:[%s2 + $0xc0] sm:$0xf]
    %v1105 = vld [vmem:[%s2 + $0xc4] sm:$0xf]
    %v1106 = vld [vmem:[%s2 + $0xc8] sm:$0xf]
    %v1107 = vld [vmem:[%s2 + $0xcc] sm:$0xf]
    %v1108 = vld [vmem:[%s2 + $0xd0] sm:$0xf]
    %v1109 = vld [vmem:[%s2 + $0xd4] sm:$0xf]
    %v1110 = vld [vmem:[%s2 + $0xd8] sm:$0xf]
    %v1111 = vld [vmem:[%s2 + $0xdc] sm:$0xf]
    %v1116 = vunpack.c.l.b16 %v526
    %v1117 = vunpack.c.l.b16 %v527
    %v1118 = vunpack.c.l.b16 %v542
    %v1119 = vunpack.c.l.b16 %v543
    %v1120 = vsel %vm578, %v849, %v848
    %v1121 = vsel %vm580, %v1116, %v1120
    %v1122 = vsel %vm582, %v1117, %v1121
    %v1123 = vsel %vm584, %v850, %v1122
    %v1124 = vsel %vm586, %v851, %v1123
    %v1125 = vsel %vm588, %v1118, %v1124
    %v1126 = vsel %vm590, %v1119, %v1125
    %v1127 = vpack.c.b16 %v1126, %v1126
    %v1136 = vunpack.c.l.b16 %v1104
    %v1137 = vunpack.c.l.b16 %v1105
    %v1138 = vunpack.c.l.b16 %v1106
    %v1139 = vunpack.c.l.b16 %v1107
    %v1140 = vunpack.c.l.b16 %v1108
    %v1141 = vunpack.c.l.b16 %v1109
    %v1142 = vunpack.c.l.b16 %v1110
    %v1143 = vunpack.c.l.b16 %v1111
    %v1144 = vpack.c.b16 %v1137, %v1136
    %v1145 = vpack.c.b16 %v1139, %v1138
    %v1146 = vpack.c.b16 %v1141, %v1140
    %v1147 = vpack.c.b16 %v1143, %v1142
    %v1153 = vsel %vm617, %v1127, 0
    %1155 = vmatprep.subr.bf16.mxu0 0
    %1156 = vmatpush1.bf16.msra.mxu0 %v1144
    %1157 = vmatprep.subr.bf16.mxu0 0
    %1158 = vmatpush1.bf16.msra.mxu0 %v1145
    %1159 = vmatprep.subr.bf16.mxu0 0
    %1160 = vmatpush1.bf16.msra.mxu0 %v1146
    %1161 = vmatprep.subr.bf16.mxu0 0
    %1162 = vmatpush1.bf16.msra.mxu0 %v1147
    %1163 = vmatprep.subr.bf16.mxu0 0
    %1164 = vmatpush1.bf16.msra.mxu0 0
    %1165 = vmatprep.subr.bf16.mxu0 0
    %1166 = vmatpush1.bf16.msra.mxu0 0
    %1167 = vmatprep.subr.bf16.mxu0 0
    %1168 = vmatpush1.bf16.msra.mxu0 0
    %1169 = vmatprep.subr.bf16.mxu0 0
    %1170 = vmatpush1.bf16.msra.mxu0 0
    %1171 = vmatprep.subr.bf16.mxu0 0
    %1172 = vmatpush1.bf16.msra.mxu0 0
    %1173 = vmatprep.subr.bf16.mxu0 0
    %1174 = vmatpush1.bf16.msra.mxu0 0
    %1175 = vmatprep.subr.bf16.mxu0 0
    %1176 = vmatpush1.bf16.msra.mxu0 0
    %1177 = vmatprep.subr.bf16.mxu0 0
    %1178 = vmatpush1.bf16.msra.mxu0 0
    %1179 = vmatprep.subr.bf16.mxu0 0
    %1180 = vmatpush1.bf16.msra.mxu0 0
    %1181 = vmatprep.subr.bf16.mxu0 0
    %1182 = vmatpush1.bf16.msra.mxu0 0
    %1183 = vmatprep.subr.bf16.mxu0 0
    %1184 = vmatpush1.bf16.msra.mxu0 0
    %1185 = vmatprep.subr.bf16.mxu0 0
    %1186 = vmatpush1.bf16.msra.mxu0 0
    %1187 = vmatprep.mubr.bf16.mxu0 0
    %1188 = vmatmul.mubr.bf16.gmra.mrb[0].mxu0 %v1153
    %v1189 = vpop.f32.mrb[0].mxu0
    %v1190 = vadd.f32 0.0, %v1189
    %v1191 = vpop.f32.mrb[0].mxu0
    %v1192 = vpop.f32.mrb[0].mxu0
    %v1193 = vpop.f32.mrb[0].mxu0
    %1194 = vdwg.mxu0
    %v1195 = vadd.f32 %v1103, %v1190
    %v1196 = vld [vmem:[%s2 + $0xe0] sm:$0xf]
    %v1197 = vld [vmem:[%s2 + $0xe4] sm:$0xf]
    %v1198 = vld [vmem:[%s2 + $0xe8] sm:$0xf]
    %v1199 = vld [vmem:[%s2 + $0xec] sm:$0xf]
    %v1200 = vld [vmem:[%s2 + $0xf0] sm:$0xf]
    %v1201 = vld [vmem:[%s2 + $0xf4] sm:$0xf]
    %v1202 = vld [vmem:[%s2 + $0xf8] sm:$0xf]
    %v1203 = vld [vmem:[%s2 + $0xfc] sm:$0xf]
    %v1206 = vunpack.c.l.b16 %v528
    %v1207 = vunpack.c.l.b16 %v544
    %v1208 = vsel %vm578, %v938, %v849
    %v1209 = vsel %vm580, %v1117, %v1208
    %v1210 = vsel %vm582, %v1206, %v1209
    %v1211 = vsel %vm584, %v851, %v1210
    %v1212 = vsel %vm586, %v939, %v1211
    %v1213 = vsel %vm588, %v1119, %v1212
    %v1214 = vsel %vm590, %v1207, %v1213
    %v1215 = vpack.c.b16 %v1214, %v1214
    %v1224 = vunpack.c.l.b16 %v1196
    %v1225 = vunpack.c.l.b16 %v1197
    %v1226 = vunpack.c.l.b16 %v1198
    %v1227 = vunpack.c.l.b16 %v1199
    %v1228 = vunpack.c.l.b16 %v1200
    %v1229 = vunpack.c.l.b16 %v1201
    %v1230 = vunpack.c.l.b16 %v1202
    %v1231 = vunpack.c.l.b16 %v1203
    %v1232 = vpack.c.b16 %v1225, %v1224
    %v1233 = vpack.c.b16 %v1227, %v1226
    %v1234 = vpack.c.b16 %v1229, %v1228
    %v1235 = vpack.c.b16 %v1231, %v1230
    %v1241 = vsel %vm617, %v1215, 0
    %1243 = vmatprep.subr.bf16.mxu0 0
    %1244 = vmatpush1.bf16.msra.mxu0 %v1232
    %1245 = vmatprep.subr.bf16.mxu0 0
    %1246 = vmatpush1.bf16.msra.mxu0 %v1233
    %1247 = vmatprep.subr.bf16.mxu0 0
    %1248 = vmatpush1.bf16.msra.mxu0 %v1234
    %1249 = vmatprep.subr.bf16.mxu0 0
    %1250 = vmatpush1.bf16.msra.mxu0 %v1235
    %1251 = vmatprep.subr.bf16.mxu0 0
    %1252 = vmatpush1.bf16.msra.mxu0 0
    %1253 = vmatprep.subr.bf16.mxu0 0
    %1254 = vmatpush1.bf16.msra.mxu0 0
    %1255 = vmatprep.subr.bf16.mxu0 0
    %1256 = vmatpush1.bf16.msra.mxu0 0
    %1257 = vmatprep.subr.bf16.mxu0 0
    %1258 = vmatpush1.bf16.msra.mxu0 0
    %1259 = vmatprep.subr.bf16.mxu0 0
    %1260 = vmatpush1.bf16.msra.mxu0 0
    %1261 = vmatprep.subr.bf16.mxu0 0
    %1262 = vmatpush1.bf16.msra.mxu0 0
    %1263 = vmatprep.subr.bf16.mxu0 0
    %1264 = vmatpush1.bf16.msra.mxu0 0
    %1265 = vmatprep.subr.bf16.mxu0 0
    %1266 = vmatpush1.bf16.msra.mxu0 0
    %1267 = vmatprep.subr.bf16.mxu0 0
    %1268 = vmatpush1.bf16.msra.mxu0 0
    %1269 = vmatprep.subr.bf16.mxu0 0
    %1270 = vmatpush1.bf16.msra.mxu0 0
    %1271 = vmatprep.subr.bf16.mxu0 0
    %1272 = vmatpush1.bf16.msra.mxu0 0
    %1273 = vmatprep.subr.bf16.mxu0 0
    %1274 = vmatpush1.bf16.msra.mxu0 0
    %1275 = vmatprep.mubr.bf16.mxu0 0
    %1276 = vmatmul.mubr.bf16.gmra.mrb[0].mxu0 %v1241
    %v1277 = vpop.f32.mrb[0].mxu0
    %v1278 = vadd.f32 0.0, %v1277
    %v1279 = vpop.f32.mrb[0].mxu0
    %v1280 = vpop.f32.mrb[0].mxu0
    %v1281 = vpop.f32.mrb[0].mxu0
    %1282 = vdwg.mxu0
    %v1283 = vadd.f32 %v1195, %v1278
    %v1284 = vld [vmem:[%s2 + $0x100] sm:$0xf]
    %v1285 = vld [vmem:[%s2 + $0x104] sm:$0xf]
    %v1286 = vld [vmem:[%s2 + $0x108] sm:$0xf]
    %v1287 = vld [vmem:[%s2 + $0x10c] sm:$0xf]
    %v1288 = vld [vmem:[%s2 + $0x110] sm:$0xf]
    %v1289 = vld [vmem:[%s2 + $0x114] sm:$0xf]
    %v1290 = vld [vmem:[%s2 + $0x118] sm:$0xf]
    %v1291 = vld [vmem:[%s2 + $0x11c] sm:$0xf]
    %v1294 = vunpack.c.l.b16 %v529
    %v1295 = vunpack.c.l.b16 %v545
    %v1296 = vsel %vm578, %v1026, %v938
    %v1297 = vsel %vm580, %v1206, %v1296
    %v1298 = vsel %vm582, %v1294, %v1297
    %v1299 = vsel %vm584, %v939, %v1298
    %v1300 = vsel %vm586, %v1027, %v1299
    %v1301 = vsel %vm588, %v1207, %v1300
    %v1302 = vsel %vm590, %v1295, %v1301
    %v1303 = vpack.c.b16 %v1302, %v1302
    %v1312 = vunpack.c.l.b16 %v1284
    %v1313 = vunpack.c.l.b16 %v1285
    %v1314 = vunpack.c.l.b16 %v1286
    %v1315 = vunpack.c.l.b16 %v1287
    %v1316 = vunpack.c.l.b16 %v1288
    %v1317 = vunpack.c.l.b16 %v1289
    %v1318 = vunpack.c.l.b16 %v1290
    %v1319 = vunpack.c.l.b16 %v1291
    %v1320 = vpack.c.b16 %v1313, %v1312
    %v1321 = vpack.c.b16 %v1315, %v1314
    %v1322 = vpack.c.b16 %v1317, %v1316
    %v1323 = vpack.c.b16 %v1319, %v1318
    %v1329 = vsel %vm617, %v1303, 0
    %1331 = vmatprep.subr.bf16.mxu0 0
    %1332 = vmatpush1.bf16.msra.mxu0 %v1320
    %1333 = vmatprep.subr.bf16.mxu0 0
    %1334 = vmatpush1.bf16.msra.mxu0 %v1321
    %1335 = vmatprep.subr.bf16.mxu0 0
    %1336 = vmatpush1.bf16.msra.mxu0 %v1322
    %1337 = vmatprep.subr.bf16.mxu0 0
    %1338 = vmatpush1.bf16.msra.mxu0 %v1323
    %1339 = vmatprep.subr.bf16.mxu0 0
    %1340 = vmatpush1.bf16.msra.mxu0 0
    %1341 = vmatprep.subr.bf16.mxu0 0
    %1342 = vmatpush1.bf16.msra.mxu0 0
    %1343 = vmatprep.subr.bf16.mxu0 0
    %1344 = vmatpush1.bf16.msra.mxu0 0
    %1345 = vmatprep.subr.bf16.mxu0 0
    %1346 = vmatpush1.bf16.msra.mxu0 0
    %1347 = vmatprep.subr.bf16.mxu0 0
    %1348 = vmatpush1.bf16.msra.mxu0 0
    %1349 = vmatprep.subr.bf16.mxu0 0
    %1350 = vmatpush1.bf16.msra.mxu0 0
    %1351 = vmatprep.subr.bf16.mxu0 0
    %1352 = vmatpush1.bf16.msra.mxu0 0
    %1353 = vmatprep.subr.bf16.mxu0 0
    %1354 = vmatpush1.bf16.msra.mxu0 0
    %1355 = vmatprep.subr.bf16.mxu0 0
    %1356 = vmatpush1.bf16.msra.mxu0 0
    %1357 = vmatprep.subr.bf16.mxu0 0
    %1358 = vmatpush1.bf16.msra.mxu0 0
    %1359 = vmatprep.subr.bf16.mxu0 0
    %1360 = vmatpush1.bf16.msra.mxu0 0
    %1361 = vmatprep.subr.bf16.mxu0 0
    %1362 = vmatpush1.bf16.msra.mxu0 0
    %1363 = vmatprep.mubr.bf16.mxu0 0
    %1364 = vmatmul.mubr.bf16.gmra.mrb[0].mxu0 %v1329
    %v1365 = vpop.f32.mrb[0].mxu0
    %v1366 = vadd.f32 0.0, %v1365
    %v1367 = vpop.f32.mrb[0].mxu0
    %v1368 = vpop.f32.mrb[0].mxu0
    %v1369 = vpop.f32.mrb[0].mxu0
    %1370 = vdwg.mxu0
    %v1371 = vadd.f32 %v1283, %v1366
    %v1372 = vld [vmem:[%s3] sm:$0x1]
    %v1374 = vlaneseq
    %v1375 = vshrl.u32 %v1374, 7
    %v1376 = vsub.s32 0, %v1375
    %v1377 = vrot.slane %v1372, %v1376
    %v1379 = vadd.f32 %v1371, %v1377
    %v1380 = vmax.f32 %v1379, 0.0
    %v1382 = vcombine.high %v1380, %v1380
    %vm1384 = vcmask 257024
    %v1385 = vsel %vm1384, %v1380, -inf
    %v1386 = vrot.slane %v1385, 4
    %v1387 = vmax.f32 %v1385, %v1386
    %v1388 = vrot.slane %v1387, 2
    %v1389 = vmax.f32 %v1387, %v1388
    %v1390 = vrot.slane %v1389, 1
    %v1391 = vmax.f32 %v1389, %v1390
    %v1392 = vsel %vm1384, %v1382, -inf
    %v1393 = vrot.slane %v1392, 4
    %v1394 = vmax.f32 %v1392, %v1393
    %v1395 = vrot.slane %v1394, 2
    %v1396 = vmax.f32 %v1394, %v1395
    %v1397 = vrot.slane %v1396, 1
    %v1398 = vmax.f32 %v1396, %v1397
    %v1399 = vpack.c.bf16 %v1391, %v1391
    %v1400 = vpack.c.bf16 %v1398, %v1398
    %v1401 = vld [vmem:[%s4] sm:$0xf]
    %v1402 = vld [vmem:[%s4 + $0x4] sm:$0xf]
    %v1403 = vld [vmem:[%s4 + $0x8] sm:$0xf]
    %v1404 = vld [vmem:[%s4 + $0xc] sm:$0xf]
    %v1405 = vld [vmem:[%s5] sm:$0x1]
    %v1407 = vlaneseq
    %v1408 = vshrl.u32 %v1407, 7
    %v1409 = vsub.s32 0, %v1408
    %v1410 = vrot.slane %v1405, %v1409
    %v1414 = vunpack.c.l.b16 %v1399
    %v1415 = vunpack.c.l.b16 %v1400
    %v1416 = vsel %vm578, %v1415, %v1414
    %v1417 = vpack.c.b16 %v1416, %v1416
    %v1422 = vunpack.c.l.b16 %v1401
    %v1423 = vunpack.c.l.b16 %v1402
    %v1424 = vunpack.c.l.b16 %v1403
    %v1425 = vunpack.c.l.b16 %v1404
    %v1426 = vpack.c.b16 %v1423, %v1422
    %v1427 = vpack.c.b16 %v1425, %v1424
    %v1431 = vsel %vm103, %v1417, 0
    %1433 = vmatprep.subr.bf16.mxu0 0
    %1434 = vmatpush1.bf16.msra.mxu0 %v1426
    %1435 = vmatprep.subr.bf16.mxu0 0
    %1436 = vmatpush1.bf16.msra.mxu0 %v1427
    %1437 = vmatprep.subr.bf16.mxu0 0
    %1438 = vmatpush1.bf16.msra.mxu0 0
    %1439 = vmatprep.subr.bf16.mxu0 0
    %1440 = vmatpush1.bf16.msra.mxu0 0
    %1441 = vmatprep.subr.bf16.mxu0 0
    %1442 = vmatpush1.bf16.msra.mxu0 0
    %1443 = vmatprep.subr.bf16.mxu0 0
    %1444 = vmatpush1.bf16.msra.mxu0 0
    %1445 = vmatprep.subr.bf16.mxu0 0
    %1446 = vmatpush1.bf16.msra.mxu0 0
    %1447 = vmatprep.subr.bf16.mxu0 0
    %1448 = vmatpush1.bf16.msra.mxu0 0
    %1449 = vmatprep.subr.bf16.mxu0 0
    %1450 = vmatpush1.bf16.msra.mxu0 0
    %1451 = vmatprep.subr.bf16.mxu0 0
    %1452 = vmatpush1.bf16.msra.mxu0 0
    %1453 = vmatprep.subr.bf16.mxu0 0
    %1454 = vmatpush1.bf16.msra.mxu0 0
    %1455 = vmatprep.subr.bf16.mxu0 0
    %1456 = vmatpush1.bf16.msra.mxu0 0
    %1457 = vmatprep.subr.bf16.mxu0 0
    %1458 = vmatpush1.bf16.msra.mxu0 0
    %1459 = vmatprep.subr.bf16.mxu0 0
    %1460 = vmatpush1.bf16.msra.mxu0 0
    %1461 = vmatprep.subr.bf16.mxu0 0
    %1462 = vmatpush1.bf16.msra.mxu0 0
    %1463 = vmatprep.subr.bf16.mxu0 0
    %1464 = vmatpush1.bf16.msra.mxu0 0
    %1465 = vmatprep.mubr.bf16.mxu0 0
    %1466 = vmatmul.mubr.bf16.gmra.mrb[0].mxu0 %v1431
    %v1467 = vpop.f32.mrb[0].mxu0
    %v1468 = vadd.f32 %v1410, %v1467
    %v1469 = vpop.f32.mrb[0].mxu0
    %v1470 = vpop.f32.mrb[0].mxu0
    %v1471 = vpop.f32.mrb[0].mxu0
    %1472 = vdwg.mxu0
    %v1473 = vmax.f32 %v1468, 0.0
    %v1474 = vpack.c.bf16 %v1473, %v1473
    %v1475 = vld [vmem:[%s6] sm:$0xf]
    %v1476 = vld [vmem:[%s6 + $0x4] sm:$0xf]
    %v1477 = vld [vmem:[%s6 + $0x8] sm:$0xf]
    %v1478 = vld [vmem:[%s6 + $0xc] sm:$0xf]
    %v1479 = vld [vmem:[%s6 + $0x10] sm:$0xf]
    %v1480 = vld [vmem:[%s6 + $0x14] sm:$0xf]
    %v1481 = vld [vmem:[%s6 + $0x18] sm:$0xf]
    %v1482 = vld [vmem:[%s6 + $0x1c] sm:$0xf]
    %v1483 = vld [vmem:[%s6 + $0x20] sm:$0xf]
    %v1484 = vld [vmem:[%s6 + $0x24] sm:$0xf]
    %v1485 = vld [vmem:[%s6 + $0x28] sm:$0xf]
    %v1486 = vld [vmem:[%s6 + $0x2c] sm:$0xf]
    %v1487 = vld [vmem:[%s6 + $0x30] sm:$0xf]
    %v1488 = vld [vmem:[%s6 + $0x34] sm:$0xf]
    %v1489 = vld [vmem:[%s6 + $0x38] sm:$0xf]
    %v1490 = vld [vmem:[%s6 + $0x3c] sm:$0xf]
    %v1491 = vld [vmem:[%s7] sm:$0x1]
    %v1493 = vlaneseq
    %v1494 = vshrl.u32 %v1493, 7
    %v1495 = vsub.s32 0, %v1494
    %v1496 = vrot.slane %v1491, %v1495
    %v1514 = vunpack.c.l.b16 %v1475
    %v1515 = vunpack.c.l.b16 %v1476
    %v1516 = vunpack.c.l.b16 %v1477
    %v1517 = vunpack.c.l.b16 %v1478
    %v1518 = vunpack.c.l.b16 %v1479
    %v1519 = vunpack.c.l.b16 %v1480
    %v1520 = vunpack.c.l.b16 %v1481
    %v1521 = vunpack.c.l.b16 %v1482
    %v1522 = vunpack.c.l.b16 %v1483
    %v1523 = vunpack.c.l.b16 %v1484
    %v1524 = vunpack.c.l.b16 %v1485
    %v1525 = vunpack.c.l.b16 %v1486
    %v1526 = vunpack.c.l.b16 %v1487
    %v1527 = vunpack.c.l.b16 %v1488
    %v1528 = vunpack.c.l.b16 %v1489
    %v1529 = vunpack.c.l.b16 %v1490
    %v1530 = vpack.c.b16 %v1515, %v1514
    %v1531 = vpack.c.b16 %v1517, %v1516
    %v1532 = vpack.c.b16 %v1519, %v1518
    %v1533 = vpack.c.b16 %v1521, %v1520
    %v1534 = vpack.c.b16 %v1523, %v1522
    %v1535 = vpack.c.b16 %v1525, %v1524
    %v1536 = vpack.c.b16 %v1527, %v1526
    %v1537 = vpack.c.b16 %v1529, %v1528
    %1546 = vmatprep.subr.bf16.mxu0 0
    %1547 = vmatpush1.bf16.msra.mxu0 %v1530
    %1548 = vmatprep.subr.bf16.mxu0 0
    %1549 = vmatpush1.bf16.msra.mxu0 %v1531
    %1550 = vmatprep.subr.bf16.mxu0 0
    %1551 = vmatpush1.bf16.msra.mxu0 %v1532
    %1552 = vmatprep.subr.bf16.mxu0 0
    %1553 = vmatpush1.bf16.msra.mxu0 %v1533
    %1554 = vmatprep.subr.bf16.mxu0 0
    %1555 = vmatpush1.bf16.msra.mxu0 %v1534
    %1556 = vmatprep.subr.bf16.mxu0 0
    %1557 = vmatpush1.bf16.msra.mxu0 %v1535
    %1558 = vmatprep.subr.bf16.mxu0 0
    %1559 = vmatpush1.bf16.msra.mxu0 %v1536
    %1560 = vmatprep.subr.bf16.mxu0 0
    %1561 = vmatpush1.bf16.msra.mxu0 %v1537
    %1562 = vmatprep.subr.bf16.mxu0 0
    %1563 = vmatpush1.bf16.msra.mxu0 0
    %1564 = vmatprep.subr.bf16.mxu0 0
    %1565 = vmatpush1.bf16.msra.mxu0 0
    %1566 = vmatprep.subr.bf16.mxu0 0
    %1567 = vmatpush1.bf16.msra.mxu0 0
    %1568 = vmatprep.subr.bf16.mxu0 0
    %1569 = vmatpush1.bf16.msra.mxu0 0
    %1570 = vmatprep.subr.bf16.mxu0 0
    %1571 = vmatpush1.bf16.msra.mxu0 0
    %1572 = vmatprep.subr.bf16.mxu0 0
    %1573 = vmatpush1.bf16.msra.mxu0 0
    %1574 = vmatprep.subr.bf16.mxu0 0
    %1575 = vmatpush1.bf16.msra.mxu0 0
    %1576 = vmatprep.subr.bf16.mxu0 0
    %1577 = vmatpush1.bf16.msra.mxu0 0
    %1578 = vmatprep.mubr.bf16.mxu0 0
    %1579 = vmatmul.mubr.bf16.gmra.mrb[0].mxu0 %v1474
    %v1580 = vpop.f32.mrb[0].mxu0
    %v1581 = vadd.f32 %v1496, %v1580
    %v1582 = vpop.f32.mrb[0].mxu0
    %v1583 = vpop.f32.mrb[0].mxu0
    %v1584 = vpop.f32.mrb[0].mxu0
    %1585 = vdwg.mxu0
    %1586 = vst [vmem:[#allocation2] sm:$0x3] %v1581
    // Predicated region
    $region34: #{_lambda_.1} parent=1 // pred_check
      _
    $region35: #{_lambda_.1} parent=1 // pred_check_branch
      %1588 = sbr.rel (0) target = $region37
    $region36: #{_lambda_.1} parent=1 // pred_region
      %s1590 = ssub.s32 32, 32
      %1591 = vsyncadd [#allocation3], %s1590
      %s1593 = sshll.u32 [#allocation2], 4
      %s1594 = int_to_ptr.vmem [resolvable:$true] %s1593
      %1596 = dma.vmem_to_hbm [thread:$0]  %s1594, 32, %s8, [#allocation3]
    $region37: #{_lambda_.1} parent=1 // pred_fallthru
      _
    // Predicated region
    $region38: #{_lambda_.1} parent=1 // pred_check
      _
    $region39: #{_lambda_.1} parent=1 // pred_check_branch
      %1598 = sbr.rel (0) target = $region41
    $region40: #{_lambda_.1} parent=1 // pred_region
      %1599 = dma.done [#allocation3], 32
    $region41: #{_lambda_.1} parent=1 // pred_fallthru
      _
    %1600 = vsyncpa [#allocation3], 1

</llo_original>
